<compile_context>
chip_gen: v7x
topology: tpu7x:2x2x1
jax: 0.10.0
libtpu: 0.0.40
codegen_flags: <defaults>
</compile_context>

<pallas_src>
import jax
import jax.numpy as jnp
from jax.experimental import pallas as pl
from jax.experimental.pallas import tpu as pltpu


def _round_up(x, m):
    return ((x + m - 1) // m) * m


def _rep_spec(arr):
    """Full-array block replicated across the grid (constant index_map => DMA'd once)."""
    zeros = (0,) * arr.ndim
    return pl.BlockSpec(arr.shape, lambda i: zeros)


def _pad2d(a, rows, cols):
    a = jnp.asarray(a, jnp.float32)
    r, c = a.shape
    return jnp.pad(a, ((0, rows - r), (0, cols - c)))


# ---------------------------------------------------------------------------
# Fused kernel: per-bag Tier-1 work each grid step; Tier-2 on the last step.
# ---------------------------------------------------------------------------
def fused_dtfd_kernel(subh_ref, w1t_ref,
                      wvt_ref, bv_ref, wut_ref, bu_ref, ww_ref, bw_ref,
                      uwvt_ref, ubv_ref, uwut_ref, ubu_ref, uww_ref, ubw_ref,
                      uwct_ref, ubc_ref,
                      feats_ref, pred_ref):
    i = pl.program_id(0)
    n_bags = pl.num_programs(0)

    @pl.when(i == 0)
    def _init():
        feats_ref[...] = jnp.zeros_like(feats_ref)

    sub_h = subh_ref[0]                                       # (bag, in_pad) bf16

    # DimReduction: Linear(in -> m, bias=False) + ReLU. bf16 operands, f32 accumulate.
    x = jnp.maximum(
        jnp.dot(sub_h, w1t_ref[...], preferred_element_type=jnp.float32), 0.0)  # (bag, m_pad) f32

    # Gated attention (L=m, D=m, K=1).  K=1 score as a VPU/XLU lane-reduce.
    a_v = jnp.tanh(
        jnp.dot(x, wvt_ref[...], preferred_element_type=jnp.float32) + bv_ref[...])
    a_u = jax.nn.sigmoid(
        jnp.dot(x, wut_ref[...], preferred_element_type=jnp.float32) + bu_ref[...])
    s = jnp.sum(a_v * a_u * ww_ref[...], axis=-1, keepdims=True) + bw_ref[...]   # (bag, 1)

    # softmax over instances (== F.softmax(A.T, dim=1))
    s = s - jnp.max(s, axis=0, keepdims=True)
    e = jnp.exp(s)
    a = e * pl.reciprocal(jnp.sum(e, axis=0, keepdims=True), approx=True)

    # sub_M = sum_n A_n * h_n
    sub_m = jnp.sum(x * a, axis=0, keepdims=True)             # (1, m_pad)

    # Write this bag's pseudo-feature row into the grid-resident feats block.
    row = jax.lax.broadcasted_iota(jnp.int32, feats_ref.shape, 0)
    feats_ref[...] = jnp.where(row == i, sub_m, feats_ref[...])

    # ---------------- Tier 2 (UClassifier), fused under the final step ----------------
    @pl.when(i == n_bags - 1)
    def _tier2():
        f = feats_ref[...]                                    # (n_bags, m_pad)
        uv = jnp.tanh(
            jnp.dot(f, uwvt_ref[...], preferred_element_type=jnp.float32) + ubv_ref[...])
        uu = jax.nn.sigmoid(
            jnp.dot(f, uwut_ref[...], preferred_element_type=jnp.float32) + ubu_ref[...])
        us = jnp.sum(uv * uu * uww_ref[...], axis=-1, keepdims=True) + ubw_ref[...]  # (n_bags, 1)
        us = us - jnp.max(us, axis=0, keepdims=True)
        ue = jnp.exp(us)
        ua = ue * pl.reciprocal(jnp.sum(ue, axis=0, keepdims=True), approx=True)
        afeat = jnp.sum(f * ua, axis=0, keepdims=True)        # (1, m_pad)
        pred_ref[...] = (jnp.dot(afeat, uwct_ref[...],
                                 preferred_element_type=jnp.float32) + ubc_ref[...])


# ---------------------------------------------------------------------------
# Parameter initialization (deterministic, PyTorch Linear shapes: (out, in)).
# ---------------------------------------------------------------------------
def init_params(key, size, n_classes):
    in_dim, m_dim, d2 = size
    ks = jax.random.split(key, 14)

    def w(k, shape):
        return (0.05 * jax.random.normal(k, shape)).astype(jnp.float32)

    return {
        # DimReduction
        "w1": w(ks[0], (m_dim, in_dim)),
        # Tier-1 attention (L=m_dim, D=m_dim, K=1)
        "wv": w(ks[1], (m_dim, m_dim)), "bv": w(ks[2], (m_dim,)),
        "wu": w(ks[3], (m_dim, m_dim)), "bu": w(ks[4], (m_dim,)),
        "ww": w(ks[5], (1, m_dim)),     "bw": w(ks[6], (1,)),
        # Tier-1 classifier
        "wc": w(ks[7], (n_classes, m_dim)), "bc": w(ks[8], (n_classes,)),
        # UClassifier attention (L=m_dim, D=d2, K=1)
        "uwv": w(ks[9], (d2, m_dim)),  "ubv": w(ks[10], (d2,)),
        "uwu": w(ks[11], (d2, m_dim)), "ubu": w(ks[12], (d2,)),
        "uww": w(ks[13], (1, d2)),     "ubw": jnp.zeros((1,), jnp.float32),
        # UClassifier classifier
        "uwc": w(jax.random.PRNGKey(99), (n_classes, m_dim)),
        "ubc": jnp.zeros((n_classes,), jnp.float32),
    }


# ---------------------------------------------------------------------------
# Forward wrapper.
# ---------------------------------------------------------------------------
def dtfd_forward(h, params, n_bags, shuffle_key):
    N, in_dim = h.shape
    assert N % n_bags == 0, "demo assumes equal-size pseudo-bags"
    bag = N // n_bags
    m_dim = params["w1"].shape[0]
    d2 = params["uwv"].shape[0]
    n_classes = params["wc"].shape[0]

    in_pad = _round_up(in_dim, 128)
    m_pad = _round_up(m_dim, 128)
    d2_pad = _round_up(d2, 128)
    c_pad = _round_up(n_classes, 128)

    # random.shuffle + np.array_split (equal chunks) equivalent.
    perm = jax.random.permutation(shuffle_key, N)
    h_perm = jnp.pad(h[perm].astype(jnp.float32), ((0, 0), (0, in_pad - in_dim)))
    # bf16 operands for the only FLOP-heavy matmul (f32 accumulate in-kernel).
    h_bags = h_perm.reshape(n_bags, bag, in_pad).astype(jnp.bfloat16)

    # Pre-transpose weights to lane-major, zero-pad lane dims to 128 multiples,
    # lift biases to (1, pad) rows so in-kernel adds stay unmasked.
    w1t = _pad2d(params["w1"].T, in_pad, m_pad).astype(jnp.bfloat16)
    wvt = _pad2d(params["wv"].T, m_pad, m_pad)
    bv = _pad2d(params["bv"][None, :], 1, m_pad)
    wut = _pad2d(params["wu"].T, m_pad, m_pad)
    bu = _pad2d(params["bu"][None, :], 1, m_pad)
    ww = _pad2d(params["ww"], 1, m_pad)                        # single K=1 row
    bw = params["bw"].reshape(1, 1).astype(jnp.float32)

    uwvt = _pad2d(params["uwv"].T, m_pad, d2_pad)
    ubv = _pad2d(params["ubv"][None, :], 1, d2_pad)
    uwut = _pad2d(params["uwu"].T, m_pad, d2_pad)
    ubu = _pad2d(params["ubu"][None, :], 1, d2_pad)
    uww = _pad2d(params["uww"], 1, d2_pad)
    ubw = params["ubw"].reshape(1, 1).astype(jnp.float32)
    uwct = _pad2d(params["uwc"].T, m_pad, c_pad)
    ubc = _pad2d(params["ubc"][None, :], 1, c_pad)

    weights = (w1t, wvt, bv, wut, bu, ww, bw,
               uwvt, ubv, uwut, ubu, uww, ubw, uwct, ubc)

    feats_pad, pred_pad = pl.pallas_call(
        fused_dtfd_kernel,
        out_shape=(jax.ShapeDtypeStruct((n_bags, m_pad), jnp.float32),
                   jax.ShapeDtypeStruct((1, c_pad), jnp.float32)),
        grid=(n_bags,),
        in_specs=[pl.BlockSpec((1, bag, in_pad), lambda i: (i, 0, 0))]
                 + [_rep_spec(a) for a in weights],
        out_specs=(pl.BlockSpec((n_bags, m_pad), lambda i: (0, 0)),
                   pl.BlockSpec((1, c_pad), lambda i: (0, 0))),
        compiler_params=pltpu.CompilerParams(
            # The fused Tier-2 step reads the grid-resident feats accumulator,
            # so the bag axis carries state -> must stay "arbitrary".
            dimension_semantics=("arbitrary",),
            vmem_limit_bytes=32 * 1024 * 1024),
    )(h_bags, *weights)

    feats = feats_pad[:, :m_dim]            # torch.cat(slide_pseudo_feat, 0)
    pred = pred_pad[:, :n_classes]          # slide-level logits (UClassifier)
    # Per-bag Classifier_1fc: one tiny batched XLA matmul, kept out of the
    # kernel (2-lane output stores would be pure masked-store overhead there).
    sub_logits = feats @ params["wc"].T + params["bc"][None, :]
    return pred, sub_logits, feats


# ---------------------------------------------------------------------------
# Pure-JAX f32 reference (module semantics) for a correctness check.
# ---------------------------------------------------------------------------
def ref_forward(h, p, n_bags, shuffle_key):
    N, in_dim = h.shape
    bag = N // n_bags
    perm = jax.random.permutation(shuffle_key, N)
    h_bags = h[perm].reshape(n_bags, bag, in_dim)

    feats, sub_logits = [], []
    for i in range(n_bags):
        x = jnp.maximum(h_bags[i] @ p["w1"].T, 0.0)
        av = jnp.tanh(x @ p["wv"].T + p["bv"])
        au = jax.nn.sigmoid(x @ p["wu"].T + p["bu"])
        a = (av * au) @ p["ww"].T + p["bw"]          # (bag, 1)
        a = jax.nn.softmax(a[:, 0])
        sub_m = jnp.sum(x * a[:, None], axis=0, keepdims=True)
        feats.append(sub_m)
        sub_logits.append(sub_m @ p["wc"].T + p["bc"])
    feats = jnp.concatenate(feats, axis=0)
    sub_logits = jnp.concatenate(sub_logits, axis=0)

    av = jnp.tanh(feats @ p["uwv"].T + p["ubv"])
    au = jax.nn.sigmoid(feats @ p["uwu"].T + p["ubu"])
    a = jax.nn.softmax(((av * au) @ p["uww"].T + p["ubw"])[:, 0])
    afeat = a[None, :] @ feats
    pred = afeat @ p["uwc"].T + p["ubc"]
    return pred, sub_logits, feats


if __name__ == "__main__":
    size = (64, 32, 16)   # (input_dim, m_dim, attention D of UClassifier)
    n_classes = 2
    n_bags = 3
    N = 12                # 12 instances -> 3 pseudo-bags of 4

    key = jax.random.PRNGKey(0)
    k_h, k_p, k_shuffle = jax.random.split(key, 3)

    h = jax.random.normal(k_h, (N, size[0]), dtype=jnp.float32)
    params = init_params(k_p, size, n_classes)

    pred, sub_logits, feats = dtfd_forward(h, params, n_bags, k_shuffle)
    jax.block_until_ready((pred, sub_logits, feats))

    pred_r, sub_logits_r, feats_r = ref_forward(h, params, n_bags, k_shuffle)
    # bf16 DimReduction operands + approx-EUP reciprocal in the kernel vs. the
    # pure-f32 reference -> loosened tolerance.
    tol = dict(atol=2e-2, rtol=2e-2)
    assert jnp.allclose(pred, pred_r, **tol), "slide logits mismatch"
    assert jnp.allclose(sub_logits, sub_logits_r, **tol), "sub logits mismatch"
    assert jnp.allclose(feats, feats_r, **tol), "pseudo feats mismatch"

    print("KERNEL_OK")
</pallas_src>

<mosaic_0001>
module attributes {stable_mosaic.version = 11 : i64} {
  func.func @fused_dtfd_kernel(%arg0: i32, %arg1: memref<1x4x128xbf16, #tpu.memory_space<vmem>>, %arg2: memref<128x128xbf16, #tpu.memory_space<vmem>>, %arg3: memref<128x128xf32, #tpu.memory_space<vmem>>, %arg4: memref<1x128xf32, #tpu.memory_space<vmem>>, %arg5: memref<128x128xf32, #tpu.memory_space<vmem>>, %arg6: memref<1x128xf32, #tpu.memory_space<vmem>>, %arg7: memref<1x128xf32, #tpu.memory_space<vmem>>, %arg8: memref<1x1xf32, #tpu.memory_space<vmem>>, %arg9: memref<128x128xf32, #tpu.memory_space<vmem>>, %arg10: memref<1x128xf32, #tpu.memory_space<vmem>>, %arg11: memref<128x128xf32, #tpu.memory_space<vmem>>, %arg12: memref<1x128xf32, #tpu.memory_space<vmem>>, %arg13: memref<1x128xf32, #tpu.memory_space<vmem>>, %arg14: memref<1x1xf32, #tpu.memory_space<vmem>>, %arg15: memref<128x128xf32, #tpu.memory_space<vmem>>, %arg16: memref<1x128xf32, #tpu.memory_space<vmem>>, %arg17: memref<3x128xf32, #tpu.memory_space<vmem>>, %arg18: memref<1x128xf32, #tpu.memory_space<vmem>>) attributes {dimension_semantics = [#tpu.dimension_semantics<arbitrary>], iteration_bounds = array<i64: 3>, scalar_prefetch = 0 : i64, scratch_operands = 0 : i64, tpu.core_type = #tpu.core_type<tc>, window_params = [{transform_indices = @transform_0, window_bounds = array<i64: 1, 4, 128>}, {pipeline_mode = #tpu.pipeline_mode<synchronous>, transform_indices = @transform_1, window_bounds = array<i64: 128, 128>}, {pipeline_mode = #tpu.pipeline_mode<synchronous>, transform_indices = @transform_2, window_bounds = array<i64: 128, 128>}, {pipeline_mode = #tpu.pipeline_mode<synchronous>, transform_indices = @transform_3, window_bounds = array<i64: 1, 128>}, {pipeline_mode = #tpu.pipeline_mode<synchronous>, transform_indices = @transform_4, window_bounds = array<i64: 128, 128>}, {pipeline_mode = #tpu.pipeline_mode<synchronous>, transform_indices = @transform_5, window_bounds = array<i64: 1, 128>}, {pipeline_mode = #tpu.pipeline_mode<synchronous>, transform_indices = @transform_6, window_bounds = array<i64: 1, 128>}, {pipeline_mode = #tpu.pipeline_mode<synchronous>, transform_indices = @transform_7, window_bounds = array<i64: 1, 1>}, {pipeline_mode = #tpu.pipeline_mode<synchronous>, transform_indices = @transform_8, window_bounds = array<i64: 128, 128>}, {pipeline_mode = #tpu.pipeline_mode<synchronous>, transform_indices = @transform_9, window_bounds = array<i64: 1, 128>}, {pipeline_mode = #tpu.pipeline_mode<synchronous>, transform_indices = @transform_10, window_bounds = array<i64: 128, 128>}, {pipeline_mode = #tpu.pipeline_mode<synchronous>, transform_indices = @transform_11, window_bounds = array<i64: 1, 128>}, {pipeline_mode = #tpu.pipeline_mode<synchronous>, transform_indices = @transform_12, window_bounds = array<i64: 1, 128>}, {pipeline_mode = #tpu.pipeline_mode<synchronous>, transform_indices = @transform_13, window_bounds = array<i64: 1, 1>}, {pipeline_mode = #tpu.pipeline_mode<synchronous>, transform_indices = @transform_14, window_bounds = array<i64: 128, 128>}, {pipeline_mode = #tpu.pipeline_mode<synchronous>, transform_indices = @transform_15, window_bounds = array<i64: 1, 128>}, {pipeline_mode = #tpu.pipeline_mode<synchronous>, transform_indices = @transform_16, window_bounds = array<i64: 3, 128>}, {pipeline_mode = #tpu.pipeline_mode<synchronous>, transform_indices = @transform_17, window_bounds = array<i64: 1, 128>}]} {
    %c0_i32 = arith.constant 0 : i32
    %0 = arith.cmpi eq, %arg0, %c0_i32 : i32
    %1 = arith.extui %0 : i1 to i32
    %c0_i32_0 = arith.constant 0 : i32
    %2 = arith.cmpi ne, %1, %c0_i32_0 : i32
    scf.if %2 {
      %cst_30 = arith.constant 0.000000e+00 : f32
      %59 = vector.broadcast %cst_30 : f32 to vector<3x128xf32>
      %c0_31 = arith.constant 0 : index
      %c0_32 = arith.constant 0 : index
      %60 = vector.load %arg17[%c0_31, %c0_32] : memref<3x128xf32, #tpu.memory_space<vmem>>, vector<3x128xf32>
      tpu.vector_store %arg17[%c0_31, %c0_32], %59 {strides = array<i32>} : memref<3x128xf32, #tpu.memory_space<vmem>>, vector<3x128xf32>,
    } else {
    }
    %c0 = arith.constant 0 : index
    %c0_1 = arith.constant 0 : index
    %c0_2 = arith.constant 0 : index
    %3 = vector.load %arg1[%c0, %c0_1, %c0_2] : memref<1x4x128xbf16, #tpu.memory_space<vmem>>, vector<1x4x128xbf16>
    %4 = vector.shape_cast %3 : vector<1x4x128xbf16> to vector<4x128xbf16>
    %c0_3 = arith.constant 0 : index
    %c0_4 = arith.constant 0 : index
    %5 = vector.load %arg2[%c0_3, %c0_4] : memref<128x128xbf16, #tpu.memory_space<vmem>>, vector<128x128xbf16>
    %cst = arith.constant dense<0.000000e+00> : vector<4x128xf32>
    %6 = tpu.matmul %4, %5, %cst {dimension_numbers = #tpu.dot_dimension_numbers<[1], [0], [0], [1], [0, 0, 1, 1], [], []>} : vector<4x128xbf16>, vector<128x128xbf16>, vector<4x128xf32> -> vector<4x128xf32>
    %cst_5 = arith.constant 0.000000e+00 : f32
    %7 = vector.broadcast %cst_5 : f32 to vector<4x128xf32>
    %8 = arith.maximumf %6, %7 : vector<4x128xf32>
    %c0_6 = arith.constant 0 : index
    %c0_7 = arith.constant 0 : index
    %9 = vector.load %arg3[%c0_6, %c0_7] : memref<128x128xf32, #tpu.memory_space<vmem>>, vector<128x128xf32>
    %cst_8 = arith.constant dense<0.000000e+00> : vector<4x128xf32>
    %10 = tpu.matmul %8, %9, %cst_8 {dimension_numbers = #tpu.dot_dimension_numbers<[1], [0], [0], [1], [0, 0, 1, 1], [], []>} : vector<4x128xf32>, vector<128x128xf32>, vector<4x128xf32> -> vector<4x128xf32>
    %c0_9 = arith.constant 0 : index
    %c0_10 = arith.constant 0 : index
    %11 = vector.load %arg4[%c0_9, %c0_10] : memref<1x128xf32, #tpu.memory_space<vmem>>, vector<1x128xf32>
    %12 = vector.broadcast %11 : vector<1x128xf32> to vector<4x128xf32>
    %13 = arith.addf %10, %12 : vector<4x128xf32>
    %14 = math.tanh %13 : vector<4x128xf32>
    %c0_11 = arith.constant 0 : index
    %c0_12 = arith.constant 0 : index
    %15 = vector.load %arg5[%c0_11, %c0_12] : memref<128x128xf32, #tpu.memory_space<vmem>>, vector<128x128xf32>
    %cst_13 = arith.constant dense<0.000000e+00> : vector<4x128xf32>
    %16 = tpu.matmul %8, %15, %cst_13 {dimension_numbers = #tpu.dot_dimension_numbers<[1], [0], [0], [1], [0, 0, 1, 1], [], []>} : vector<4x128xf32>, vector<128x128xf32>, vector<4x128xf32> -> vector<4x128xf32>
    %c0_14 = arith.constant 0 : index
    %c0_15 = arith.constant 0 : index
    %17 = vector.load %arg6[%c0_14, %c0_15] : memref<1x128xf32, #tpu.memory_space<vmem>>, vector<1x128xf32>
    %18 = vector.broadcast %17 : vector<1x128xf32> to vector<4x128xf32>
    %19 = arith.addf %16, %18 : vector<4x128xf32>
    %20 = arith.negf %19 : vector<4x128xf32>
    %21 = math.exp %20 : vector<4x128xf32>
    %cst_16 = arith.constant 1.000000e+00 : f32
    %22 = vector.broadcast %cst_16 : f32 to vector<4x128xf32>
    %23 = arith.addf %22, %21 : vector<4x128xf32>
    %24 = arith.divf %22, %23 : vector<4x128xf32>
    %25 = arith.mulf %14, %24 : vector<4x128xf32>
    %c0_17 = arith.constant 0 : index
    %c0_18 = arith.constant 0 : index
    %26 = vector.load %arg7[%c0_17, %c0_18] : memref<1x128xf32, #tpu.memory_space<vmem>>, vector<1x128xf32>
    %27 = vector.broadcast %26 : vector<1x128xf32> to vector<4x128xf32>
    %28 = arith.mulf %25, %27 : vector<4x128xf32>
    %cst_19 = arith.constant dense<0.000000e+00> : vector<4xf32>
    %29 = vector.multi_reduction <add>, %28, %cst_19 [1] : vector<4x128xf32> to vector<4xf32>
    %30 = vector.shape_cast %29 : vector<4xf32> to vector<4x1xf32>
    %c0_20 = arith.constant 0 : index
    %c0_21 = arith.constant 0 : index
    %31 = vector.load %arg8[%c0_20, %c0_21] : memref<1x1xf32, #tpu.memory_space<vmem>>, vector<1x1xf32>
    %32 = vector.broadcast %31 : vector<1x1xf32> to vector<4x1xf32>
    %33 = arith.addf %30, %32 : vector<4x1xf32>
    %cst_22 = arith.constant dense<0xFF800000> : vector<1xf32>
    %34 = vector.multi_reduction <maximumf>, %33, %cst_22 [0] : vector<4x1xf32> to vector<1xf32>
    %35 = vector.shape_cast %34 : vector<1xf32> to vector<1x1xf32>
    %36 = vector.broadcast %35 : vector<1x1xf32> to vector<4x1xf32>
    %37 = arith.subf %33, %36 : vector<4x1xf32>
    %38 = math.exp %37 : vector<4x1xf32>
    %cst_23 = arith.constant dense<0.000000e+00> : vector<1xf32>
    %39 = vector.multi_reduction <add>, %38, %cst_23 [0] : vector<4x1xf32> to vector<1xf32>
    %40 = vector.shape_cast %39 : vector<1xf32> to vector<1x1xf32>
    %41 = tpu.reciprocal %40 {approx = true} : vector<1x1xf32> -> vector<1x1xf32>
    %42 = vector.broadcast %41 : vector<1x1xf32> to vector<4x1xf32>
    %43 = arith.mulf %38, %42 : vector<4x1xf32>
    %44 = vector.broadcast %43 : vector<4x1xf32> to vector<4x128xf32>
    %45 = arith.mulf %8, %44 : vector<4x128xf32>
    %cst_24 = arith.constant dense<0.000000e+00> : vector<128xf32>
    %46 = vector.multi_reduction <add>, %45, %cst_24 [0] : vector<4x128xf32> to vector<128xf32>
    %47 = vector.shape_cast %46 : vector<128xf32> to vector<1x128xf32>
    %48 = tpu.iota {dimensions = array<i32: 0>} : vector<3x128xi32>
    %49 = vector.broadcast %arg0 : i32 to vector<3x128xi32>
    %50 = arith.cmpi eq, %48, %49 : vector<3x128xi32>
    %c0_25 = arith.constant 0 : index
    %c0_26 = arith.constant 0 : index
    %51 = vector.load %arg17[%c0_25, %c0_26] : memref<3x128xf32, #tpu.memory_space<vmem>>, vector<3x128xf32>
    %52 = vector.shape_cast %47 : vector<1x128xf32> to vector<1x128xf32>
    %53 = vector.broadcast %52 : vector<1x128xf32> to vector<3x128xf32>
    %54 = arith.select %50, %53, %51 : vector<3x128xi1>, vector<3x128xf32>
    %c0_27 = arith.constant 0 : index
    %c0_28 = arith.constant 0 : index
    %55 = vector.load %arg17[%c0_27, %c0_28] : memref<3x128xf32, #tpu.memory_space<vmem>>, vector<3x128xf32>
    tpu.vector_store %arg17[%c0_27, %c0_28], %54 {strides = array<i32>} : memref<3x128xf32, #tpu.memory_space<vmem>>, vector<3x128xf32>,
    %c2_i32 = arith.constant 2 : i32
    %56 = arith.cmpi eq, %arg0, %c2_i32 : i32
    %57 = arith.extui %56 : i1 to i32
    %c0_i32_29 = arith.constant 0 : i32
    %58 = arith.cmpi ne, %57, %c0_i32_29 : i32
    scf.if %58 {
      %c0_30 = arith.constant 0 : index
      %c0_31 = arith.constant 0 : index
      %59 = vector.load %arg17[%c0_30, %c0_31] : memref<3x128xf32, #tpu.memory_space<vmem>>, vector<3x128xf32>
      %c0_32 = arith.constant 0 : index
      %c0_33 = arith.constant 0 : index
      %60 = vector.load %arg9[%c0_32, %c0_33] : memref<128x128xf32, #tpu.memory_space<vmem>>, vector<128x128xf32>
      %cst_34 = arith.constant dense<0.000000e+00> : vector<3x128xf32>
      %61 = tpu.matmul %59, %60, %cst_34 {dimension_numbers = #tpu.dot_dimension_numbers<[1], [0], [0], [1], [0, 0, 1, 1], [], []>} : vector<3x128xf32>, vector<128x128xf32>, vector<3x128xf32> -> vector<3x128xf32>
      %c0_35 = arith.constant 0 : index
      %c0_36 = arith.constant 0 : index
      %62 = vector.load %arg10[%c0_35, %c0_36] : memref<1x128xf32, #tpu.memory_space<vmem>>, vector<1x128xf32>
      %63 = vector.broadcast %62 : vector<1x128xf32> to vector<3x128xf32>
      %64 = arith.addf %61, %63 : vector<3x128xf32>
      %65 = math.tanh %64 : vector<3x128xf32>
      %c0_37 = arith.constant 0 : index
      %c0_38 = arith.constant 0 : index
      %66 = vector.load %arg11[%c0_37, %c0_38] : memref<128x128xf32, #tpu.memory_space<vmem>>, vector<128x128xf32>
      %cst_39 = arith.constant dense<0.000000e+00> : vector<3x128xf32>
      %67 = tpu.matmul %59, %66, %cst_39 {dimension_numbers = #tpu.dot_dimension_numbers<[1], [0], [0], [1], [0, 0, 1, 1], [], []>} : vector<3x128xf32>, vector<128x128xf32>, vector<3x128xf32> -> vector<3x128xf32>
      %c0_40 = arith.constant 0 : index
      %c0_41 = arith.constant 0 : index
      %68 = vector.load %arg12[%c0_40, %c0_41] : memref<1x128xf32, #tpu.memory_space<vmem>>, vector<1x128xf32>
      %69 = vector.broadcast %68 : vector<1x128xf32> to vector<3x128xf32>
      %70 = arith.addf %67, %69 : vector<3x128xf32>
      %71 = arith.negf %70 : vector<3x128xf32>
      %72 = math.exp %71 : vector<3x128xf32>
      %cst_42 = arith.constant 1.000000e+00 : f32
      %73 = vector.broadcast %cst_42 : f32 to vector<3x128xf32>
      %74 = arith.addf %73, %72 : vector<3x128xf32>
      %75 = arith.divf %73, %74 : vector<3x128xf32>
      %76 = arith.mulf %65, %75 : vector<3x128xf32>
      %c0_43 = arith.constant 0 : index
      %c0_44 = arith.constant 0 : index
      %77 = vector.load %arg13[%c0_43, %c0_44] : memref<1x128xf32, #tpu.memory_space<vmem>>, vector<1x128xf32>
      %78 = vector.broadcast %77 : vector<1x128xf32> to vector<3x128xf32>
      %79 = arith.mulf %76, %78 : vector<3x128xf32>
      %cst_45 = arith.constant dense<0.000000e+00> : vector<3xf32>
      %80 = vector.multi_reduction <add>, %79, %cst_45 [1] : vector<3x128xf32> to vector<3xf32>
      %81 = vector.shape_cast %80 : vector<3xf32> to vector<3x1xf32>
      %c0_46 = arith.constant 0 : index
      %c0_47 = arith.constant 0 : index
      %82 = vector.load %arg14[%c0_46, %c0_47] : memref<1x1xf32, #tpu.memory_space<vmem>>, vector<1x1xf32>
      %83 = vector.broadcast %82 : vector<1x1xf32> to vector<3x1xf32>
      %84 = arith.addf %81, %83 : vector<3x1xf32>
      %cst_48 = arith.constant dense<0xFF800000> : vector<1xf32>
      %85 = vector.multi_reduction <maximumf>, %84, %cst_48 [0] : vector<3x1xf32> to vector<1xf32>
      %86 = vector.shape_cast %85 : vector<1xf32> to vector<1x1xf32>
      %87 = vector.broadcast %86 : vector<1x1xf32> to vector<3x1xf32>
      %88 = arith.subf %84, %87 : vector<3x1xf32>
      %89 = math.exp %88 : vector<3x1xf32>
      %cst_49 = arith.constant dense<0.000000e+00> : vector<1xf32>
      %90 = vector.multi_reduction <add>, %89, %cst_49 [0] : vector<3x1xf32> to vector<1xf32>
      %91 = vector.shape_cast %90 : vector<1xf32> to vector<1x1xf32>
      %92 = tpu.reciprocal %91 {approx = true} : vector<1x1xf32> -> vector<1x1xf32>
      %93 = vector.broadcast %92 : vector<1x1xf32> to vector<3x1xf32>
      %94 = arith.mulf %89, %93 : vector<3x1xf32>
      %95 = vector.broadcast %94 : vector<3x1xf32> to vector<3x128xf32>
      %96 = arith.mulf %59, %95 : vector<3x128xf32>
      %cst_50 = arith.constant dense<0.000000e+00> : vector<128xf32>
      %97 = vector.multi_reduction <add>, %96, %cst_50 [0] : vector<3x128xf32> to vector<128xf32>
      %98 = vector.shape_cast %97 : vector<128xf32> to vector<1x128xf32>
      %c0_51 = arith.constant 0 : index
      %c0_52 = arith.constant 0 : index
      %99 = vector.load %arg15[%c0_51, %c0_52] : memref<128x128xf32, #tpu.memory_space<vmem>>, vector<128x128xf32>
      %cst_53 = arith.constant dense<0.000000e+00> : vector<1x128xf32>
      %100 = tpu.matmul %98, %99, %cst_53 {dimension_numbers = #tpu.dot_dimension_numbers<[1], [0], [0], [1], [0, 0, 1, 1], [], []>} : vector<1x128xf32>, vector<128x128xf32>, vector<1x128xf32> -> vector<1x128xf32>
      %c0_54 = arith.constant 0 : index
      %c0_55 = arith.constant 0 : index
      %101 = vector.load %arg16[%c0_54, %c0_55] : memref<1x128xf32, #tpu.memory_space<vmem>>, vector<1x128xf32>
      %102 = arith.addf %100, %101 : vector<1x128xf32>
      %c0_56 = arith.constant 0 : index
      %c0_57 = arith.constant 0 : index
      %103 = vector.load %arg18[%c0_56, %c0_57] : memref<1x128xf32, #tpu.memory_space<vmem>>, vector<1x128xf32>
      tpu.vector_store %arg18[%c0_56, %c0_57], %102 {strides = array<i32>} : memref<1x128xf32, #tpu.memory_space<vmem>>, vector<1x128xf32>,
    } else {
    }
    return
  }
  func.func @transform_0(%arg0: i32) -> (i32, i32, i32) {
    %c0_i32 = arith.constant 0 : i32
    %c0_i32_0 = arith.constant 0 : i32
    %c0_i32_1 = arith.constant 0 : i32
    return %arg0, %c0_i32, %c0_i32_0 : i32, i32, i32
  }
  func.func @transform_1(%arg0: i32) -> (i32, i32) {
    %c0_i32 = arith.constant 0 : i32
    %c0_i32_0 = arith.constant 0 : i32
    %c0_i32_1 = arith.constant 0 : i32
    return %c0_i32, %c0_i32_0 : i32, i32
  }
  func.func @transform_2(%arg0: i32) -> (i32, i32) {
    %c0_i32 = arith.constant 0 : i32
    %c0_i32_0 = arith.constant 0 : i32
    %c0_i32_1 = arith.constant 0 : i32
    return %c0_i32, %c0_i32_0 : i32, i32
  }
  func.func @transform_3(%arg0: i32) -> (i32, i32) {
    %c0_i32 = arith.constant 0 : i32
    %c0_i32_0 = arith.constant 0 : i32
    %c0_i32_1 = arith.constant 0 : i32
    return %c0_i32, %c0_i32_0 : i32, i32
  }
  func.func @transform_4(%arg0: i32) -> (i32, i32) {
    %c0_i32 = arith.constant 0 : i32
    %c0_i32_0 = arith.constant 0 : i32
    %c0_i32_1 = arith.constant 0 : i32
    return %c0_i32, %c0_i32_0 : i32, i32
  }
  func.func @transform_5(%arg0: i32) -> (i32, i32) {
    %c0_i32 = arith.constant 0 : i32
    %c0_i32_0 = arith.constant 0 : i32
    %c0_i32_1 = arith.constant 0 : i32
    return %c0_i32, %c0_i32_0 : i32, i32
  }
  func.func @transform_6(%arg0: i32) -> (i32, i32) {
    %c0_i32 = arith.constant 0 : i32
    %c0_i32_0 = arith.constant 0 : i32
    %c0_i32_1 = arith.constant 0 : i32
    return %c0_i32, %c0_i32_0 : i32, i32
  }
  func.func @transform_7(%arg0: i32) -> (i32, i32) {
    %c0_i32 = arith.constant 0 : i32
    %c0_i32_0 = arith.constant 0 : i32
    %c0_i32_1 = arith.constant 0 : i32
    return %c0_i32, %c0_i32_0 : i32, i32
  }
  func.func @transform_8(%arg0: i32) -> (i32, i32) {
    %c0_i32 = arith.constant 0 : i32
    %c0_i32_0 = arith.constant 0 : i32
    %c0_i32_1 = arith.constant 0 : i32
    return %c0_i32, %c0_i32_0 : i32, i32
  }
  func.func @transform_9(%arg0: i32) -> (i32, i32) {
    %c0_i32 = arith.constant 0 : i32
    %c0_i32_0 = arith.constant 0 : i32
    %c0_i32_1 = arith.constant 0 : i32
    return %c0_i32, %c0_i32_0 : i32, i32
  }
  func.func @transform_10(%arg0: i32) -> (i32, i32) {
    %c0_i32 = arith.constant 0 : i32
    %c0_i32_0 = arith.constant 0 : i32
    %c0_i32_1 = arith.constant 0 : i32
    return %c0_i32, %c0_i32_0 : i32, i32
  }
  func.func @transform_11(%arg0: i32) -> (i32, i32) {
    %c0_i32 = arith.constant 0 : i32
    %c0_i32_0 = arith.constant 0 : i32
    %c0_i32_1 = arith.constant 0 : i32
    return %c0_i32, %c0_i32_0 : i32, i32
  }
  func.func @transform_12(%arg0: i32) -> (i32, i32) {
    %c0_i32 = arith.constant 0 : i32
    %c0_i32_0 = arith.constant 0 : i32
    %c0_i32_1 = arith.constant 0 : i32
    return %c0_i32, %c0_i32_0 : i32, i32
  }
  func.func @transform_13(%arg0: i32) -> (i32, i32) {
    %c0_i32 = arith.constant 0 : i32
    %c0_i32_0 = arith.constant 0 : i32
    %c0_i32_1 = arith.constant 0 : i32
    return %c0_i32, %c0_i32_0 : i32, i32
  }
  func.func @transform_14(%arg0: i32) -> (i32, i32) {
    %c0_i32 = arith.constant 0 : i32
    %c0_i32_0 = arith.constant 0 : i32
    %c0_i32_1 = arith.constant 0 : i32
    return %c0_i32, %c0_i32_0 : i32, i32
  }
  func.func @transform_15(%arg0: i32) -> (i32, i32) {
    %c0_i32 = arith.constant 0 : i32
    %c0_i32_0 = arith.constant 0 : i32
    %c0_i32_1 = arith.constant 0 : i32
    return %c0_i32, %c0_i32_0 : i32, i32
  }
  func.func @transform_16(%arg0: i32) -> (i32, i32) {
    %c0_i32 = arith.constant 0 : i32
    %c0_i32_0 = arith.constant 0 : i32
    %c0_i32_1 = arith.constant 0 : i32
    return %c0_i32, %c0_i32_0 : i32, i32
  }
  func.func @transform_17(%arg0: i32) -> (i32, i32) {
    %c0_i32 = arith.constant 0 : i32
    %c0_i32_0 = arith.constant 0 : i32
    %c0_i32_1 = arith.constant 0 : i32
    return %c0_i32, %c0_i32_0 : i32, i32
  }
}

</mosaic_0001>

<llo_original>
// kernel: tpu_custom_call.1
$region0: #{tpu_custom_call.1}
  #allocation0 [shape = 'u32[]', space=smem, size = 0x4, offset = 0x4, fixed_abs, tag = 'smem constant byte address 0x4 - core index']
  #allocation1 [shape = 'u32[144,128]{1,0:T(1,128)}', space=vmem, size = 0x12000, scoped, tag = 'internal scratch']
  #allocation2 [shape = 'f32[1,1]{1,0:T(1,128)S(1)}', space=vmem, size = 0x200, scoped, tag = 'scoped memory for tpu_custom_call.1']
  #allocation3 [shape = 'f32[1,1]{1,0:T(1,128)S(1)}', space=vmem, size = 0x200, scoped, tag = 'scoped memory for tpu_custom_call.1']
  %s0 = inlined_call_operand.vmem [shape: bf16[3,4,128], index: 0, kind: input, shape index: {}]
  %s1 = inlined_call_operand.hbm [shape: bf16[128,128], index: 1, kind: input, shape index: {}]
  %s2 = inlined_call_operand.hbm [shape: f32[128,128], index: 2, kind: input, shape index: {}]
  %s3 = inlined_call_operand.vmem [shape: f32[1,128], index: 3, kind: input, shape index: {}]
  %s4 = inlined_call_operand.hbm [shape: f32[128,128], index: 4, kind: input, shape index: {}]
  %s5 = inlined_call_operand.vmem [shape: f32[1,128], index: 5, kind: input, shape index: {}]
  %s6 = inlined_call_operand.vmem [shape: f32[1,128], index: 6, kind: input, shape index: {}]
  %s7 = inlined_call_operand.<no memory space> [shape: f32[1,1], index: 7, kind: input, shape index: {}]
  %s8 = inlined_call_operand.hbm [shape: f32[128,128], index: 8, kind: input, shape index: {}]
  %s9 = inlined_call_operand.vmem [shape: f32[1,128], index: 9, kind: input, shape index: {}]
  %s10 = inlined_call_operand.hbm [shape: f32[128,128], index: 10, kind: input, shape index: {}]
  %s11 = inlined_call_operand.vmem [shape: f32[1,128], index: 11, kind: input, shape index: {}]
  %s12 = inlined_call_operand.vmem [shape: f32[1,128], index: 12, kind: input, shape index: {}]
  %s13 = inlined_call_operand.<no memory space> [shape: f32[1,1], index: 13, kind: input, shape index: {}]
  %s14 = inlined_call_operand.hbm [shape: f32[128,128], index: 14, kind: input, shape index: {}]
  %s15 = inlined_call_operand.vmem [shape: f32[1,128], index: 15, kind: input, shape index: {}]
  %s16 = inlined_call_operand.hbm [shape: f32[3,128], index: 16, kind: output, shape index: {0}]
  %s17 = inlined_call_operand.hbm [shape: f32[1,128], index: 17, kind: output, shape index: {1}]
  %18 = xla_tuple %s16, %s17
  %s19 = sld [smem:[#allocation0]]
  $region137: #{tpu_custom_call.1} parent=0
    _
  %s21 = ssub.s32 1, %s19
  %s22 = scalar_select 0, %s21, %s19
  %v23 = vstv %s7
  %24 = vst [vmem:[#allocation2] sm:$0x1] %v23
  %v25 = vstv %s13
  %26 = vst [vmem:[#allocation3] sm:$0x1] %v25
  $region1: #{tpu_custom_call.1} parent=0
    #allocation4 [shape = 'u8[32768]{0}', space=vmem, size = 0x8000, scoped, tag = 'input window, operand 1, single buffered']
    #allocation5 [shape = 's32[2]{0}', space=sflag, size = 0x8, scoped, tag = 'scoped memory for tpu_custom_call.1']
    #allocation6 [shape = 's32[2]{0}', space=sflag, size = 0x8, scoped, tag = 'scoped memory for tpu_custom_call.1']
    #allocation7 [shape = 'u8[65536]{0}', space=vmem, size = 0x10000, scoped, tag = 'input window, operand 2, single buffered']
    #allocation8 [shape = 's32[1]{0}', space=sflag, size = 0x4, scoped, tag = 'scoped memory for tpu_custom_call.1']
    #allocation9 [shape = 'u8[65536]{0}', space=vmem, size = 0x10000, scoped, tag = 'input window, operand 4, single buffered']
    #allocation10 [shape = 'u8[65536]{0}', space=vmem, size = 0x10000, scoped, tag = 'input window, operand 8, single buffered']
    #allocation11 [shape = 's32[1]{0}', space=sflag, size = 0x4, scoped, tag = 'scoped memory for tpu_custom_call.1']
    #allocation12 [shape = 'u8[65536]{0}', space=vmem, size = 0x10000, scoped, tag = 'input window, operand 10, single buffered']
    #allocation13 [shape = 'u8[65536]{0}', space=vmem, size = 0x10000, scoped, tag = 'input window, operand 14, single buffered']
    #allocation14 [shape = 's32[1]{0}', space=sflag, size = 0x4, scoped, tag = 'scoped memory for tpu_custom_call.1']
    #allocation15 [shape = 'u8[2048]{0}', space=vmem, size = 0x800, scoped, tag = 'output window, operand 0, single buffered']
    #allocation16 [shape = 'u8[512]{0}', space=vmem, size = 0x400, scoped, tag = 'output window, operand 1, single buffered']
    #allocation17 [shape = 's32[1]{0}', space=sflag, size = 0x4, scoped, tag = 'scoped memory for tpu_custom_call.1']
    %27 = vsyncpa [#allocation5], 0
    %28 = vsyncpa [#allocation8], 0
    %29 = vsyncpa [#allocation11], 0
    %30 = vsyncpa [#allocation14], 0
    %31 = vsyncpa [#allocation6], 0
    %32 = vsyncpa [#allocation17], 0
    loop: start=0, step=1, limit=5
    $region2: #{tpu_custom_call.1} parent=1 // loop_pre_header
      _
    $region3: #{tpu_custom_call.1} parent=1 // loop_header
      %s34 = sphi 0, %s38
      %p35 = scmp.ge.s32.totalorder %s34, 5
      %s44 = sphi 0, %s46
      %s47 = sphi 0, %s44
      %s48 = sphi 0, %s47
      %s64 = sphi 0, %s48
      %s68 = sphi 0, %s68
      %s70 = sphi 0, %s68
      %s71 = sphi 0, %s70
      %s85 = sphi 0, %s71
      %s89 = sphi 0, %s89
      %s91 = sphi 0, %s89
      %s92 = sphi 0, %s91
      %s106 = sphi 0, %s92
      %s110 = sphi 0, %s110
      %s112 = sphi 0, %s110
      %s113 = sphi 0, %s112
      %s127 = sphi 0, %s113
      %s131 = sphi 0, %s131
      %s133 = sphi 0, %s131
      %s134 = sphi 0, %s133
      %s148 = sphi 0, %s134
      %s152 = sphi 0, %s152
      %s154 = sphi 0, %s152
      %s155 = sphi 0, %s154
      %s169 = sphi 0, %s155
      %s173 = sphi 0, %s173
      %s175 = sphi 0, %s173
      %s176 = sphi 0, %s175
      %s190 = sphi 0, %s176
      %s194 = sphi 0, %s194
      %s196 = sphi 0, %s194
      %s197 = sphi 0, %s196
      %s211 = sphi 0, %s197
      %s215 = sphi 0, %s215
      %s217 = sphi 0, %s215
      %s218 = sphi 0, %s217
      %s232 = sphi 0, %s218
      %s236 = sphi 0, %s236
      %s238 = sphi 0, %s236
      %s239 = sphi 0, %s238
      %s253 = sphi 0, %s239
      %s257 = sphi 0, %s257
      %s259 = sphi 0, %s257
      %s260 = sphi 0, %s259
      %s274 = sphi 0, %s260
      %s278 = sphi 0, %s278
      %s280 = sphi 0, %s278
      %s281 = sphi 0, %s280
      %s295 = sphi 0, %s281
      %s299 = sphi 0, %s299
      %s301 = sphi 0, %s299
      %s302 = sphi 0, %s301
      %s316 = sphi 0, %s302
      %s320 = sphi 0, %s320
      %s322 = sphi 0, %s320
      %s323 = sphi 0, %s322
      %s337 = sphi 0, %s323
      %s341 = sphi 0, %s341
      %s343 = sphi 0, %s341
      %s344 = sphi 0, %s343
      %s358 = sphi 0, %s344
      %s362 = sphi 0, %s362
      %s364 = sphi 0, %s362
      %s365 = sphi 0, %s364
      %s379 = sphi 0, %s365
      %s383 = sphi 0, %s383
      %s385 = sphi 0, %s383
      %s386 = sphi 0, %s385
      %s400 = sphi 0, %s386
      %s404 = sphi 0, %s404
      %s406 = sphi 0, %s404
      %s407 = sphi 0, %s406
      %s421 = sphi 0, %s407
    $region4: #{tpu_custom_call.1} parent=1 // loop_header_branch
      %37 = sbr.rel (%p35) target = $region8
    $region5: #{tpu_custom_call.1} parent=1 // loop_body
      %s39 = ssub.s32 %s34, 1
      %s40 = ssub.s32 %s34, 2
      %s41 = sadd.s32 %s34, 1
      %s42 = ssub.s32 %s34, %s41
      %p43 = scmp.eq.s32.totalorder %s42, 0
      %s45 = sadd.s32 %s44, 1
      %s46 = scalar_select %p43, %s44, %s45
      %p49 = pneg %p43
      %p50 = scmp.eq.s32.totalorder %s34, 2
      %p51 = por %p49, %p50
      %p52 = scmp.ne.s32.totalorder %s44, %s47
      %p53 = scmp.eq.s32.totalorder %s34, 0
      %p54 = por %p52, %p53
      %p55 = scmp.ne.s32.totalorder %s44, %s47
      %p56 = scmp.eq.s32.totalorder %s39, 2
      %p57 = por %p55, %p56
      %p58 = scmp.ne.s32.totalorder %s47, %s48
      %p59 = scmp.eq.s32.totalorder %s39, 0
      %p60 = por %p58, %p59
      %p61 = scmp.ne.s32.totalorder %s47, %s48
      %p62 = scmp.eq.s32.totalorder %s40, 2
      %p63 = por %p61, %p62
      %p65 = scmp.ne.s32.totalorder %s48, %s64
      %p66 = scmp.eq.s32.totalorder %s40, 0
      %p67 = por %p65, %p66
      %s69 = sadd.s32 %s68, 1
      %p72 = scmp.eq.s32.totalorder %s34, 2
      %p73 = scmp.ne.s32.totalorder %s68, %s70
      %p74 = scmp.eq.s32.totalorder %s34, 0
      %p75 = por %p73, %p74
      %p76 = scmp.ne.s32.totalorder %s68, %s70
      %p77 = scmp.eq.s32.totalorder %s39, 2
      %p78 = por %p76, %p77
      %p79 = scmp.ne.s32.totalorder %s70, %s71
      %p80 = scmp.eq.s32.totalorder %s39, 0
      %p81 = por %p79, %p80
      %p82 = scmp.ne.s32.totalorder %s70, %s71
      %p83 = scmp.eq.s32.totalorder %s40, 2
      %p84 = por %p82, %p83
      %p86 = scmp.ne.s32.totalorder %s71, %s85
      %p87 = scmp.eq.s32.totalorder %s40, 0
      %p88 = por %p86, %p87
      %s90 = sadd.s32 %s89, 1
      %p93 = scmp.eq.s32.totalorder %s34, 2
      %p94 = scmp.ne.s32.totalorder %s89, %s91
      %p95 = scmp.eq.s32.totalorder %s34, 0
      %p96 = por %p94, %p95
      %p97 = scmp.ne.s32.totalorder %s89, %s91
      %p98 = scmp.eq.s32.totalorder %s39, 2
      %p99 = por %p97, %p98
      %p100 = scmp.ne.s32.totalorder %s91, %s92
      %p101 = scmp.eq.s32.totalorder %s39, 0
      %p102 = por %p100, %p101
      %p103 = scmp.ne.s32.totalorder %s91, %s92
      %p104 = scmp.eq.s32.totalorder %s40, 2
      %p105 = por %p103, %p104
      %p107 = scmp.ne.s32.totalorder %s92, %s106
      %p108 = scmp.eq.s32.totalorder %s40, 0
      %p109 = por %p107, %p108
      %s111 = sadd.s32 %s110, 1
      %p114 = scmp.eq.s32.totalorder %s34, 2
      %p115 = scmp.ne.s32.totalorder %s110, %s112
      %p116 = scmp.eq.s32.totalorder %s34, 0
      %p117 = por %p115, %p116
      %p118 = scmp.ne.s32.totalorder %s110, %s112
      %p119 = scmp.eq.s32.totalorder %s39, 2
      %p120 = por %p118, %p119
      %p121 = scmp.ne.s32.totalorder %s112, %s113
      %p122 = scmp.eq.s32.totalorder %s39, 0
      %p123 = por %p121, %p122
      %p124 = scmp.ne.s32.totalorder %s112, %s113
      %p125 = scmp.eq.s32.totalorder %s40, 2
      %p126 = por %p124, %p125
      %p128 = scmp.ne.s32.totalorder %s113, %s127
      %p129 = scmp.eq.s32.totalorder %s40, 0
      %p130 = por %p128, %p129
      %s132 = sadd.s32 %s131, 1
      %p135 = scmp.eq.s32.totalorder %s34, 2
      %p136 = scmp.ne.s32.totalorder %s131, %s133
      %p137 = scmp.eq.s32.totalorder %s34, 0
      %p138 = por %p136, %p137
      %p139 = scmp.ne.s32.totalorder %s131, %s133
      %p140 = scmp.eq.s32.totalorder %s39, 2
      %p141 = por %p139, %p140
      %p142 = scmp.ne.s32.totalorder %s133, %s134
      %p143 = scmp.eq.s32.totalorder %s39, 0
      %p144 = por %p142, %p143
      %p145 = scmp.ne.s32.totalorder %s133, %s134
      %p146 = scmp.eq.s32.totalorder %s40, 2
      %p147 = por %p145, %p146
      %p149 = scmp.ne.s32.totalorder %s134, %s148
      %p150 = scmp.eq.s32.totalorder %s40, 0
      %p151 = por %p149, %p150
      %s153 = sadd.s32 %s152, 1
      %p156 = scmp.eq.s32.totalorder %s34, 2
      %p157 = scmp.ne.s32.totalorder %s152, %s154
      %p158 = scmp.eq.s32.totalorder %s34, 0
      %p159 = por %p157, %p158
      %p160 = scmp.ne.s32.totalorder %s152, %s154
      %p161 = scmp.eq.s32.totalorder %s39, 2
      %p162 = por %p160, %p161
      %p163 = scmp.ne.s32.totalorder %s154, %s155
      %p164 = scmp.eq.s32.totalorder %s39, 0
      %p165 = por %p163, %p164
      %p166 = scmp.ne.s32.totalorder %s154, %s155
      %p167 = scmp.eq.s32.totalorder %s40, 2
      %p168 = por %p166, %p167
      %p170 = scmp.ne.s32.totalorder %s155, %s169
      %p171 = scmp.eq.s32.totalorder %s40, 0
      %p172 = por %p170, %p171
      %s174 = sadd.s32 %s173, 1
      %p177 = scmp.eq.s32.totalorder %s34, 2
      %p178 = scmp.ne.s32.totalorder %s173, %s175
      %p179 = scmp.eq.s32.totalorder %s34, 0
      %p180 = por %p178, %p179
      %p181 = scmp.ne.s32.totalorder %s173, %s175
      %p182 = scmp.eq.s32.totalorder %s39, 2
      %p183 = por %p181, %p182
      %p184 = scmp.ne.s32.totalorder %s175, %s176
      %p185 = scmp.eq.s32.totalorder %s39, 0
      %p186 = por %p184, %p185
      %p187 = scmp.ne.s32.totalorder %s175, %s176
      %p188 = scmp.eq.s32.totalorder %s40, 2
      %p189 = por %p187, %p188
      %p191 = scmp.ne.s32.totalorder %s176, %s190
      %p192 = scmp.eq.s32.totalorder %s40, 0
      %p193 = por %p191, %p192
      %s195 = sadd.s32 %s194, 1
      %p198 = scmp.eq.s32.totalorder %s34, 2
      %p199 = scmp.ne.s32.totalorder %s194, %s196
      %p200 = scmp.eq.s32.totalorder %s34, 0
      %p201 = por %p199, %p200
      %p202 = scmp.ne.s32.totalorder %s194, %s196
      %p203 = scmp.eq.s32.totalorder %s39, 2
      %p204 = por %p202, %p203
      %p205 = scmp.ne.s32.totalorder %s196, %s197
      %p206 = scmp.eq.s32.totalorder %s39, 0
      %p207 = por %p205, %p206
      %p208 = scmp.ne.s32.totalorder %s196, %s197
      %p209 = scmp.eq.s32.totalorder %s40, 2
      %p210 = por %p208, %p209
      %p212 = scmp.ne.s32.totalorder %s197, %s211
      %p213 = scmp.eq.s32.totalorder %s40, 0
      %p214 = por %p212, %p213
      %s216 = sadd.s32 %s215, 1
      %p219 = scmp.eq.s32.totalorder %s34, 2
      %p220 = scmp.ne.s32.totalorder %s215, %s217
      %p221 = scmp.eq.s32.totalorder %s34, 0
      %p222 = por %p220, %p221
      %p223 = scmp.ne.s32.totalorder %s215, %s217
      %p224 = scmp.eq.s32.totalorder %s39, 2
      %p225 = por %p223, %p224
      %p226 = scmp.ne.s32.totalorder %s217, %s218
      %p227 = scmp.eq.s32.totalorder %s39, 0
      %p228 = por %p226, %p227
      %p229 = scmp.ne.s32.totalorder %s217, %s218
      %p230 = scmp.eq.s32.totalorder %s40, 2
      %p231 = por %p229, %p230
      %p233 = scmp.ne.s32.totalorder %s218, %s232
      %p234 = scmp.eq.s32.totalorder %s40, 0
      %p235 = por %p233, %p234
      %s237 = sadd.s32 %s236, 1
      %p240 = scmp.eq.s32.totalorder %s34, 2
      %p241 = scmp.ne.s32.totalorder %s236, %s238
      %p242 = scmp.eq.s32.totalorder %s34, 0
      %p243 = por %p241, %p242
      %p244 = scmp.ne.s32.totalorder %s236, %s238
      %p245 = scmp.eq.s32.totalorder %s39, 2
      %p246 = por %p244, %p245
      %p247 = scmp.ne.s32.totalorder %s238, %s239
      %p248 = scmp.eq.s32.totalorder %s39, 0
      %p249 = por %p247, %p248
      %p250 = scmp.ne.s32.totalorder %s238, %s239
      %p251 = scmp.eq.s32.totalorder %s40, 2
      %p252 = por %p250, %p251
      %p254 = scmp.ne.s32.totalorder %s239, %s253
      %p255 = scmp.eq.s32.totalorder %s40, 0
      %p256 = por %p254, %p255
      %s258 = sadd.s32 %s257, 1
      %p261 = scmp.eq.s32.totalorder %s34, 2
      %p262 = scmp.ne.s32.totalorder %s257, %s259
      %p263 = scmp.eq.s32.totalorder %s34, 0
      %p264 = por %p262, %p263
      %p265 = scmp.ne.s32.totalorder %s257, %s259
      %p266 = scmp.eq.s32.totalorder %s39, 2
      %p267 = por %p265, %p266
      %p268 = scmp.ne.s32.totalorder %s259, %s260
      %p269 = scmp.eq.s32.totalorder %s39, 0
      %p270 = por %p268, %p269
      %p271 = scmp.ne.s32.totalorder %s259, %s260
      %p272 = scmp.eq.s32.totalorder %s40, 2
      %p273 = por %p271, %p272
      %p275 = scmp.ne.s32.totalorder %s260, %s274
      %p276 = scmp.eq.s32.totalorder %s40, 0
      %p277 = por %p275, %p276
      %s279 = sadd.s32 %s278, 1
      %p282 = scmp.eq.s32.totalorder %s34, 2
      %p283 = scmp.ne.s32.totalorder %s278, %s280
      %p284 = scmp.eq.s32.totalorder %s34, 0
      %p285 = por %p283, %p284
      %p286 = scmp.ne.s32.totalorder %s278, %s280
      %p287 = scmp.eq.s32.totalorder %s39, 2
      %p288 = por %p286, %p287
      %p289 = scmp.ne.s32.totalorder %s280, %s281
      %p290 = scmp.eq.s32.totalorder %s39, 0
      %p291 = por %p289, %p290
      %p292 = scmp.ne.s32.totalorder %s280, %s281
      %p293 = scmp.eq.s32.totalorder %s40, 2
      %p294 = por %p292, %p293
      %p296 = scmp.ne.s32.totalorder %s281, %s295
      %p297 = scmp.eq.s32.totalorder %s40, 0
      %p298 = por %p296, %p297
      %s300 = sadd.s32 %s299, 1
      %p303 = scmp.eq.s32.totalorder %s34, 2
      %p304 = scmp.ne.s32.totalorder %s299, %s301
      %p305 = scmp.eq.s32.totalorder %s34, 0
      %p306 = por %p304, %p305
      %p307 = scmp.ne.s32.totalorder %s299, %s301
      %p308 = scmp.eq.s32.totalorder %s39, 2
      %p309 = por %p307, %p308
      %p310 = scmp.ne.s32.totalorder %s301, %s302
      %p311 = scmp.eq.s32.totalorder %s39, 0
      %p312 = por %p310, %p311
      %p313 = scmp.ne.s32.totalorder %s301, %s302
      %p314 = scmp.eq.s32.totalorder %s40, 2
      %p315 = por %p313, %p314
      %p317 = scmp.ne.s32.totalorder %s302, %s316
      %p318 = scmp.eq.s32.totalorder %s40, 0
      %p319 = por %p317, %p318
      %s321 = sadd.s32 %s320, 1
      %p324 = scmp.eq.s32.totalorder %s34, 2
      %p325 = scmp.ne.s32.totalorder %s320, %s322
      %p326 = scmp.eq.s32.totalorder %s34, 0
      %p327 = por %p325, %p326
      %p328 = scmp.ne.s32.totalorder %s320, %s322
      %p329 = scmp.eq.s32.totalorder %s39, 2
      %p330 = por %p328, %p329
      %p331 = scmp.ne.s32.totalorder %s322, %s323
      %p332 = scmp.eq.s32.totalorder %s39, 0
      %p333 = por %p331, %p332
      %p334 = scmp.ne.s32.totalorder %s322, %s323
      %p335 = scmp.eq.s32.totalorder %s40, 2
      %p336 = por %p334, %p335
      %p338 = scmp.ne.s32.totalorder %s323, %s337
      %p339 = scmp.eq.s32.totalorder %s40, 0
      %p340 = por %p338, %p339
      %s342 = sadd.s32 %s341, 1
      %p345 = scmp.eq.s32.totalorder %s34, 2
      %p346 = scmp.ne.s32.totalorder %s341, %s343
      %p347 = scmp.eq.s32.totalorder %s34, 0
      %p348 = por %p346, %p347
      %p349 = scmp.ne.s32.totalorder %s341, %s343
      %p350 = scmp.eq.s32.totalorder %s39, 2
      %p351 = por %p349, %p350
      %p352 = scmp.ne.s32.totalorder %s343, %s344
      %p353 = scmp.eq.s32.totalorder %s39, 0
      %p354 = por %p352, %p353
      %p355 = scmp.ne.s32.totalorder %s343, %s344
      %p356 = scmp.eq.s32.totalorder %s40, 2
      %p357 = por %p355, %p356
      %p359 = scmp.ne.s32.totalorder %s344, %s358
      %p360 = scmp.eq.s32.totalorder %s40, 0
      %p361 = por %p359, %p360
      %s363 = sadd.s32 %s362, 1
      %p366 = scmp.eq.s32.totalorder %s34, 2
      %p367 = scmp.ne.s32.totalorder %s362, %s364
      %p368 = scmp.eq.s32.totalorder %s34, 0
      %p369 = por %p367, %p368
      %p370 = scmp.ne.s32.totalorder %s362, %s364
      %p371 = scmp.eq.s32.totalorder %s39, 2
      %p372 = por %p370, %p371
      %p373 = scmp.ne.s32.totalorder %s364, %s365
      %p374 = scmp.eq.s32.totalorder %s39, 0
      %p375 = por %p373, %p374
      %p376 = scmp.ne.s32.totalorder %s364, %s365
      %p377 = scmp.eq.s32.totalorder %s40, 2
      %p378 = por %p376, %p377
      %p380 = scmp.ne.s32.totalorder %s365, %s379
      %p381 = scmp.eq.s32.totalorder %s40, 0
      %p382 = por %p380, %p381
      %s384 = sadd.s32 %s383, 1
      %p387 = scmp.eq.s32.totalorder %s34, 2
      %p388 = scmp.ne.s32.totalorder %s383, %s385
      %p389 = scmp.eq.s32.totalorder %s34, 0
      %p390 = por %p388, %p389
      %p391 = scmp.ne.s32.totalorder %s383, %s385
      %p392 = scmp.eq.s32.totalorder %s39, 2
      %p393 = por %p391, %p392
      %p394 = scmp.ne.s32.totalorder %s385, %s386
      %p395 = scmp.eq.s32.totalorder %s39, 0
      %p396 = por %p394, %p395
      %p397 = scmp.ne.s32.totalorder %s385, %s386
      %p398 = scmp.eq.s32.totalorder %s40, 2
      %p399 = por %p397, %p398
      %p401 = scmp.ne.s32.totalorder %s386, %s400
      %p402 = scmp.eq.s32.totalorder %s40, 0
      %p403 = por %p401, %p402
      %s405 = sadd.s32 %s404, 1
      %p408 = scmp.eq.s32.totalorder %s34, 2
      %p409 = scmp.ne.s32.totalorder %s404, %s406
      %p410 = scmp.eq.s32.totalorder %s34, 0
      %p411 = por %p409, %p410
      %p412 = scmp.ne.s32.totalorder %s404, %s406
      %p413 = scmp.eq.s32.totalorder %s39, 2
      %p414 = por %p412, %p413
      %p415 = scmp.ne.s32.totalorder %s406, %s407
      %p416 = scmp.eq.s32.totalorder %s39, 0
      %p417 = por %p415, %p416
      %p418 = scmp.ne.s32.totalorder %s406, %s407
      %p419 = scmp.eq.s32.totalorder %s40, 2
      %p420 = por %p418, %p419
      %p422 = scmp.ne.s32.totalorder %s407, %s421
      %p423 = scmp.eq.s32.totalorder %s40, 0
      %p424 = por %p422, %p423
      %p425 = scmp.le.s32.totalorder 1, %s34
      %p426 = scmp.lt.s32.totalorder %s34, 4
      %p427 = pnand %p425, %p426
      %p428 = pneg %p427
      // Predicated region
      $region9: #{tpu_custom_call.1} parent=5 // pred_check
        _
      $region10: #{tpu_custom_call.1} parent=5 // pred_check_branch
        %430 = sbr.rel (%p427) target = $region12
      $region11: #{tpu_custom_call.1} parent=5 // pred_region
        %s431 = ssub.s32 %s34, 1
        // Predicated region
        $region13: #{tpu_custom_call.1} parent=11 // pred_check
          %p432 = pneg %p81
        $region14: #{tpu_custom_call.1} parent=11 // pred_check_branch
          %434 = sbr.rel (%p432) target = $region16
        $region15: #{tpu_custom_call.1} parent=11 // pred_region
          %s436 = ssub.s32 1024, 1024
          %437 = vsyncadd [#allocation5], %s436
          %s438 = sshll.u32 [#allocation4], 4
          %s439 = int_to_ptr.vmem [resolvable:$true] %s438
          %444 = dma.hbm_to_vmem [thread:$0]  %s1, 1024, %s439, [#allocation5], 64, 64, 4
        $region16: #{tpu_custom_call.1} parent=11 // pred_fallthru
          _
        // Predicated region
        $region17: #{tpu_custom_call.1} parent=11 // pred_check
          %p445 = pneg %p102
        $region18: #{tpu_custom_call.1} parent=11 // pred_check_branch
          %447 = sbr.rel (%p445) target = $region20
        $region19: #{tpu_custom_call.1} parent=11 // pred_region
          %s449 = ssub.s32 2048, 2048
          %450 = vsyncadd [#allocation8], %s449
          %s451 = sshll.u32 [#allocation7], 4
          %s452 = int_to_ptr.vmem [resolvable:$true] %s451
          %457 = dma.hbm_to_vmem [thread:$0]  %s2, 2048, %s452, [#allocation8], 128, 128, 8
        $region20: #{tpu_custom_call.1} parent=11 // pred_fallthru
          _
        // Predicated region
        $region21: #{tpu_custom_call.1} parent=11 // pred_check
          %p458 = pneg %p123
        $region22: #{tpu_custom_call.1} parent=11 // pred_check_branch
          %460 = sbr.rel (%p458) target = $region24
        $region23: #{tpu_custom_call.1} parent=11 // pred_region
          _
        $region24: #{tpu_custom_call.1} parent=11 // pred_fallthru
          _
        // Predicated region
        $region25: #{tpu_custom_call.1} parent=11 // pred_check
          %p461 = pneg %p144
        $region26: #{tpu_custom_call.1} parent=11 // pred_check_branch
          %463 = sbr.rel (%p461) target = $region28
        $region27: #{tpu_custom_call.1} parent=11 // pred_region
          %s465 = ssub.s32 2048, 2048
          %466 = vsyncadd [#allocation8], %s465
          %s467 = sshll.u32 [#allocation9], 4
          %s468 = int_to_ptr.vmem [resolvable:$true] %s467
          %473 = dma.hbm_to_vmem [thread:$0]  %s4, 2048, %s468, [#allocation8], 128, 128, 8
        $region28: #{tpu_custom_call.1} parent=11 // pred_fallthru
          _
        // Predicated region
        $region29: #{tpu_custom_call.1} parent=11 // pred_check
          %p474 = pneg %p165
        $region30: #{tpu_custom_call.1} parent=11 // pred_check_branch
          %476 = sbr.rel (%p474) target = $region32
        $region31: #{tpu_custom_call.1} parent=11 // pred_region
          _
        $region32: #{tpu_custom_call.1} parent=11 // pred_fallthru
          _
        // Predicated region
        $region33: #{tpu_custom_call.1} parent=11 // pred_check
          %p477 = pneg %p186
        $region34: #{tpu_custom_call.1} parent=11 // pred_check_branch
          %479 = sbr.rel (%p477) target = $region36
        $region35: #{tpu_custom_call.1} parent=11 // pred_region
          _
        $region36: #{tpu_custom_call.1} parent=11 // pred_fallthru
          _
        // Predicated region
        $region37: #{tpu_custom_call.1} parent=11 // pred_check
          %p480 = pneg %p207
        $region38: #{tpu_custom_call.1} parent=11 // pred_check_branch
          %482 = sbr.rel (%p480) target = $region40
        $region39: #{tpu_custom_call.1} parent=11 // pred_region
          _
        $region40: #{tpu_custom_call.1} parent=11 // pred_fallthru
          _
        // Predicated region
        $region41: #{tpu_custom_call.1} parent=11 // pred_check
          %p483 = pneg %p228
        $region42: #{tpu_custom_call.1} parent=11 // pred_check_branch
          %485 = sbr.rel (%p483) target = $region44
        $region43: #{tpu_custom_call.1} parent=11 // pred_region
          %s487 = ssub.s32 2048, 2048
          %488 = vsyncadd [#allocation11], %s487
          %s489 = sshll.u32 [#allocation10], 4
          %s490 = int_to_ptr.vmem [resolvable:$true] %s489
          %495 = dma.hbm_to_vmem [thread:$0]  %s8, 2048, %s490, [#allocation11], 128, 128, 8
        $region44: #{tpu_custom_call.1} parent=11 // pred_fallthru
          _
        // Predicated region
        $region45: #{tpu_custom_call.1} parent=11 // pred_check
          %p496 = pneg %p249
        $region46: #{tpu_custom_call.1} parent=11 // pred_check_branch
          %498 = sbr.rel (%p496) target = $region48
        $region47: #{tpu_custom_call.1} parent=11 // pred_region
          _
        $region48: #{tpu_custom_call.1} parent=11 // pred_fallthru
          _
        // Predicated region
        $region49: #{tpu_custom_call.1} parent=11 // pred_check
          %p499 = pneg %p270
        $region50: #{tpu_custom_call.1} parent=11 // pred_check_branch
          %501 = sbr.rel (%p499) target = $region52
        $region51: #{tpu_custom_call.1} parent=11 // pred_region
          %s503 = ssub.s32 2048, 2048
          %504 = vsyncadd [#allocation11], %s503
          %s505 = sshll.u32 [#allocation12], 4
          %s506 = int_to_ptr.vmem [resolvable:$true] %s505
          %511 = dma.hbm_to_vmem [thread:$0]  %s10, 2048, %s506, [#allocation11], 128, 128, 8
        $region52: #{tpu_custom_call.1} parent=11 // pred_fallthru
          _
        // Predicated region
        $region53: #{tpu_custom_call.1} parent=11 // pred_check
          %p512 = pneg %p291
        $region54: #{tpu_custom_call.1} parent=11 // pred_check_branch
          %514 = sbr.rel (%p512) target = $region56
        $region55: #{tpu_custom_call.1} parent=11 // pred_region
          _
        $region56: #{tpu_custom_call.1} parent=11 // pred_fallthru
          _
        // Predicated region
        $region57: #{tpu_custom_call.1} parent=11 // pred_check
          %p515 = pneg %p312
        $region58: #{tpu_custom_call.1} parent=11 // pred_check_branch
          %517 = sbr.rel (%p515) target = $region60
        $region59: #{tpu_custom_call.1} parent=11 // pred_region
          _
        $region60: #{tpu_custom_call.1} parent=11 // pred_fallthru
          _
        // Predicated region
        $region61: #{tpu_custom_call.1} parent=11 // pred_check
          %p518 = pneg %p333
        $region62: #{tpu_custom_call.1} parent=11 // pred_check_branch
          %520 = sbr.rel (%p518) target = $region64
        $region63: #{tpu_custom_call.1} parent=11 // pred_region
          _
        $region64: #{tpu_custom_call.1} parent=11 // pred_fallthru
          _
        // Predicated region
        $region65: #{tpu_custom_call.1} parent=11 // pred_check
          %p521 = pneg %p354
        $region66: #{tpu_custom_call.1} parent=11 // pred_check_branch
          %523 = sbr.rel (%p521) target = $region68
        $region67: #{tpu_custom_call.1} parent=11 // pred_region
          %s525 = ssub.s32 2048, 2048
          %526 = vsyncadd [#allocation14], %s525
          %s527 = sshll.u32 [#allocation13], 4
          %s528 = int_to_ptr.vmem [resolvable:$true] %s527
          %533 = dma.hbm_to_vmem [thread:$0]  %s14, 2048, %s528, [#allocation14], 128, 128, 8
        $region68: #{tpu_custom_call.1} parent=11 // pred_fallthru
          _
        // Predicated region
        $region69: #{tpu_custom_call.1} parent=11 // pred_check
          %p534 = pneg %p375
        $region70: #{tpu_custom_call.1} parent=11 // pred_check_branch
          %536 = sbr.rel (%p534) target = $region72
        $region71: #{tpu_custom_call.1} parent=11 // pred_region
          _
        $region72: #{tpu_custom_call.1} parent=11 // pred_fallthru
          _
      $region12: #{tpu_custom_call.1} parent=5 // pred_fallthru
        _
      %p537 = scmp.lt.s32.totalorder %s34, 3
      // Predicated region
      $region73: #{tpu_custom_call.1} parent=5 // pred_check
        %p538 = pneg %p537
      $region74: #{tpu_custom_call.1} parent=5 // pred_check_branch
        %540 = sbr.rel (%p538) target = $region76
      $region75: #{tpu_custom_call.1} parent=5 // pred_region
        // Predicated region
        $region77: #{tpu_custom_call.1} parent=75 // pred_check
          %p541 = pneg %p54
        $region78: #{tpu_custom_call.1} parent=75 // pred_check_branch
          %543 = sbr.rel (%p541) target = $region80
        $region79: #{tpu_custom_call.1} parent=75 // pred_region
          %p544 = scmp.lt.s32.totalorder %s34, 2
          %s545 = scalar_select %p544, %s34, 2
          %s546 = smul.addr %s545, 2
          %s547 = scalar_lea.vmem %s0, %s546
        $region80: #{tpu_custom_call.1} parent=75 // pred_fallthru
          _
      $region76: #{tpu_custom_call.1} parent=5 // pred_fallthru
        _
      %p548 = scmp.le.s32.totalorder 1, %s34
      %p549 = scmp.lt.s32.totalorder %s34, 4
      %p550 = pnand %p548, %p549
      %p551 = pneg %p550
      // Predicated region
      $region81: #{tpu_custom_call.1} parent=5 // pred_check
        _
      $region82: #{tpu_custom_call.1} parent=5 // pred_check_branch
        %553 = sbr.rel (%p550) target = $region84
      $region83: #{tpu_custom_call.1} parent=5 // pred_region
        %s554 = ssub.s32 %s34, 1
        // Predicated region
        $region85: #{tpu_custom_call.1} parent=83 // pred_check
          %p555 = pneg %p81
        $region86: #{tpu_custom_call.1} parent=83 // pred_check_branch
          %557 = sbr.rel (%p555) target = $region88
        $region87: #{tpu_custom_call.1} parent=83 // pred_region
          %558 = dma.done [#allocation5], 1024
        $region88: #{tpu_custom_call.1} parent=83 // pred_fallthru
          _
        // Predicated region
        $region89: #{tpu_custom_call.1} parent=83 // pred_check
          %p559 = pneg %p102
        $region90: #{tpu_custom_call.1} parent=83 // pred_check_branch
          %561 = sbr.rel (%p559) target = $region92
        $region91: #{tpu_custom_call.1} parent=83 // pred_region
          %562 = dma.done [#allocation8], 2048
        $region92: #{tpu_custom_call.1} parent=83 // pred_fallthru
          _
        // Predicated region
        $region93: #{tpu_custom_call.1} parent=83 // pred_check
          %p563 = pneg %p144
        $region94: #{tpu_custom_call.1} parent=83 // pred_check_branch
          %565 = sbr.rel (%p563) target = $region96
        $region95: #{tpu_custom_call.1} parent=83 // pred_region
          %566 = dma.done [#allocation8], 2048
        $region96: #{tpu_custom_call.1} parent=83 // pred_fallthru
          _
        // Predicated region
        $region97: #{tpu_custom_call.1} parent=83 // pred_check
          %p567 = pneg %p228
        $region98: #{tpu_custom_call.1} parent=83 // pred_check_branch
          %569 = sbr.rel (%p567) target = $region100
        $region99: #{tpu_custom_call.1} parent=83 // pred_region
          %570 = dma.done [#allocation11], 2048
        $region100: #{tpu_custom_call.1} parent=83 // pred_fallthru
          _
        // Predicated region
        $region101: #{tpu_custom_call.1} parent=83 // pred_check
          %p571 = pneg %p270
        $region102: #{tpu_custom_call.1} parent=83 // pred_check_branch
          %573 = sbr.rel (%p571) target = $region104
        $region103: #{tpu_custom_call.1} parent=83 // pred_region
          %574 = dma.done [#allocation11], 2048
        $region104: #{tpu_custom_call.1} parent=83 // pred_fallthru
          _
        // Predicated region
        $region105: #{tpu_custom_call.1} parent=83 // pred_check
          %p575 = pneg %p354
        $region106: #{tpu_custom_call.1} parent=83 // pred_check_branch
          %577 = sbr.rel (%p575) target = $region108
        $region107: #{tpu_custom_call.1} parent=83 // pred_region
          %578 = dma.done [#allocation14], 2048
        $region108: #{tpu_custom_call.1} parent=83 // pred_fallthru
          _
        %p579 = scmp.lt.s32.totalorder %s39, 2
        %s580 = scalar_select %p579, %s39, 2
        %s581 = smul.addr %s580, 2
        %s582 = scalar_lea.vmem %s0, %s581
        %p583 = pneg %p60
        %p584 = pneg %p57
        %p585 = pneg %p81
        %p586 = pneg %p78
        %p587 = pneg %p102
        %p588 = pneg %p99
        %p589 = pneg %p123
        %p590 = pneg %p120
        %p591 = pneg %p144
        %p592 = pneg %p141
        %p593 = pneg %p165
        %p594 = pneg %p162
        %p595 = pneg %p186
        %p596 = pneg %p183
        %p597 = pneg %p207
        %p598 = pneg %p204
        %p599 = pneg %p228
        %p600 = pneg %p225
        %p601 = pneg %p249
        %p602 = pneg %p246
        %p603 = pneg %p270
        %p604 = pneg %p267
        %p605 = pneg %p291
        %p606 = pneg %p288
        %p607 = pneg %p312
        %p608 = pneg %p309
        %p609 = pneg %p333
        %p610 = pneg %p330
        %p611 = pneg %p354
        %p612 = pneg %p351
        %p613 = pneg %p375
        %p614 = pneg %p372
        %p615 = pneg %p396
        %p616 = pneg %p393
        %p617 = pneg %p417
        %p618 = pneg %p414
        %p619 = scmp.lt.s32.totalorder %s39, 2
        %s620 = scalar_select %p619, %s39, 2
        %s621 = smul.addr %s620, 2
        %s622 = scalar_lea.vmem %s0, %s621
        %p624 = scmp.eq.s32.totalorder %s39, 0
        // Predicated region
        $region109: #{tpu_custom_call.1} parent=83 // pred_check
          %p625 = pneg %p624
        $region110: #{tpu_custom_call.1} parent=83 // pred_check_branch
          %627 = sbr.rel (%p625) target = $region112
        $region111: #{tpu_custom_call.1} parent=83 // pred_region
          %628 = vst [vmem:[#allocation15] sm:$0x7] 0.0
        $region112: #{tpu_custom_call.1} parent=83 // pred_fallthru
          _
        %v629 = vld [vmem:[%s622] sm:$0x3]
        %v630 = vld [vmem:[#allocation4] sm:$0xf]
        %v631 = vld [vmem:[#allocation4 + $0x4] sm:$0xf]
        %v632 = vld [vmem:[#allocation4 + $0x8] sm:$0xf]
        %v633 = vld [vmem:[#allocation4 + $0xc] sm:$0xf]
        %v634 = vld [vmem:[#allocation4 + $0x10] sm:$0xf]
        %v635 = vld [vmem:[#allocation4 + $0x14] sm:$0xf]
        %v636 = vld [vmem:[#allocation4 + $0x18] sm:$0xf]
        %v637 = vld [vmem:[#allocation4 + $0x1c] sm:$0xf]
        %v638 = vld [vmem:[#allocation4 + $0x20] sm:$0xf]
        %v639 = vld [vmem:[#allocation4 + $0x24] sm:$0xf]
        %v640 = vld [vmem:[#allocation4 + $0x28] sm:$0xf]
        %v641 = vld [vmem:[#allocation4 + $0x2c] sm:$0xf]
        %v642 = vld [vmem:[#allocation4 + $0x30] sm:$0xf]
        %v643 = vld [vmem:[#allocation4 + $0x34] sm:$0xf]
        %v644 = vld [vmem:[#allocation4 + $0x38] sm:$0xf]
        %v645 = vld [vmem:[#allocation4 + $0x3c] sm:$0xf]
        %v662 = vunpack.c.l.b16 %v630
        %v663 = vunpack.c.l.b16 %v631
        %v664 = vunpack.c.l.b16 %v632
        %v665 = vunpack.c.l.b16 %v633
        %v666 = vunpack.c.l.b16 %v634
        %v667 = vunpack.c.l.b16 %v635
        %v668 = vunpack.c.l.b16 %v636
        %v669 = vunpack.c.l.b16 %v637
        %v670 = vunpack.c.l.b16 %v638
        %v671 = vunpack.c.l.b16 %v639
        %v672 = vunpack.c.l.b16 %v640
        %v673 = vunpack.c.l.b16 %v641
        %v674 = vunpack.c.l.b16 %v642
        %v675 = vunpack.c.l.b16 %v643
        %v676 = vunpack.c.l.b16 %v644
        %v677 = vunpack.c.l.b16 %v645
        %v678 = vpack.c.b16 %v663, %v662
        %v679 = vpack.c.b16 %v665, %v664
        %v680 = vpack.c.b16 %v667, %v666
        %v681 = vpack.c.b16 %v669, %v668
        %v682 = vpack.c.b16 %v671, %v670
        %v683 = vpack.c.b16 %v673, %v672
        %v684 = vpack.c.b16 %v675, %v674
        %v685 = vpack.c.b16 %v677, %v676
        %694 = vmatprep.subr.bf16.mxu0 0
        %695 = vmatpush1.bf16.msra.mxu0 %v678
        %696 = vmatprep.subr.bf16.mxu0 0
        %697 = vmatpush1.bf16.msra.mxu0 %v679
        %698 = vmatprep.subr.bf16.mxu0 0
        %699 = vmatpush1.bf16.msra.mxu0 %v680
        %700 = vmatprep.subr.bf16.mxu0 0
        %701 = vmatpush1.bf16.msra.mxu0 %v681
        %702 = vmatprep.subr.bf16.mxu0 0
        %703 = vmatpush1.bf16.msra.mxu0 %v682
        %704 = vmatprep.subr.bf16.mxu0 0
        %705 = vmatpush1.bf16.msra.mxu0 %v683
        %706 = vmatprep.subr.bf16.mxu0 0
        %707 = vmatpush1.bf16.msra.mxu0 %v684
        %708 = vmatprep.subr.bf16.mxu0 0
        %709 = vmatpush1.bf16.msra.mxu0 %v685
        %710 = vmatprep.subr.bf16.mxu0 0
        %711 = vmatpush1.bf16.msra.mxu0 0
        %712 = vmatprep.subr.bf16.mxu0 0
        %713 = vmatpush1.bf16.msra.mxu0 0
        %714 = vmatprep.subr.bf16.mxu0 0
        %715 = vmatpush1.bf16.msra.mxu0 0
        %716 = vmatprep.subr.bf16.mxu0 0
        %717 = vmatpush1.bf16.msra.mxu0 0
        %718 = vmatprep.subr.bf16.mxu0 0
        %719 = vmatpush1.bf16.msra.mxu0 0
        %720 = vmatprep.subr.bf16.mxu0 0
        %721 = vmatpush1.bf16.msra.mxu0 0
        %722 = vmatprep.subr.bf16.mxu0 0
        %723 = vmatpush1.bf16.msra.mxu0 0
        %724 = vmatprep.subr.bf16.mxu0 0
        %725 = vmatpush1.bf16.msra.mxu0 0
        %726 = vmatprep.mubr.bf16.mxu0 0
        %727 = vmatmul.mubr.bf16.gmra.mrb[0].mxu0 %v629
        %v728 = vpop.f32.mrb[0].mxu0
        %v729 = vadd.f32 0.0, %v728
        %v730 = vpop.f32.mrb[0].mxu0
        %v731 = vpop.f32.mrb[0].mxu0
        %v732 = vpop.f32.mrb[0].mxu0
        %733 = vdwg.mxu0
        %v734 = vmax.f32 %v729, 0.0
        %v735 = vld [vmem:[#allocation7] sm:$0xff]
        %v736 = vld [vmem:[#allocation7 + $0x8] sm:$0xff]
        %v737 = vld [vmem:[#allocation7 + $0x10] sm:$0xff]
        %v738 = vld [vmem:[#allocation7 + $0x18] sm:$0xff]
        %v739 = vld [vmem:[#allocation7 + $0x20] sm:$0xff]
        %v740 = vld [vmem:[#allocation7 + $0x28] sm:$0xff]
        %v741 = vld [vmem:[#allocation7 + $0x30] sm:$0xff]
        %v742 = vld [vmem:[#allocation7 + $0x38] sm:$0xff]
        %v743 = vld [vmem:[#allocation7 + $0x40] sm:$0xff]
        %v744 = vld [vmem:[#allocation7 + $0x48] sm:$0xff]
        %v745 = vld [vmem:[#allocation7 + $0x50] sm:$0xff]
        %v746 = vld [vmem:[#allocation7 + $0x58] sm:$0xff]
        %v747 = vld [vmem:[#allocation7 + $0x60] sm:$0xff]
        %v748 = vld [vmem:[#allocation7 + $0x68] sm:$0xff]
        %v749 = vld [vmem:[#allocation7 + $0x70] sm:$0xff]
        %v750 = vld [vmem:[#allocation7 + $0x78] sm:$0xff]
        %v751 = vld [vmem:[%s3] sm:$0x1]
        %v753 = vlaneseq
        %v754 = vshrl.u32 %v753, 7
        %v755 = vsub.s32 0, %v754
        %v756 = vrot.slane %v751, %v755
        %758 = vmatprep.subr.mxu0 0.0
        %759 = vmatpush1.msra.mxu0 %v735
        %760 = vmatprep.subr.mxu0 0.0
        %761 = vmatpush1.msra.mxu0 %v736
        %762 = vmatprep.subr.mxu0 0.0
        %763 = vmatpush1.msra.mxu0 %v737
        %764 = vmatprep.subr.mxu0 0.0
        %765 = vmatpush1.msra.mxu0 %v738
        %766 = vmatprep.subr.mxu0 0.0
        %767 = vmatpush1.msra.mxu0 %v739
        %768 = vmatprep.subr.mxu0 0.0
        %769 = vmatpush1.msra.mxu0 %v740
        %770 = vmatprep.subr.mxu0 0.0
        %771 = vmatpush1.msra.mxu0 %v741
        %772 = vmatprep.subr.mxu0 0.0
        %773 = vmatpush1.msra.mxu0 %v742
        %774 = vmatprep.subr.mxu0 0.0
        %775 = vmatpush1.msra.mxu0 %v743
        %776 = vmatprep.subr.mxu0 0.0
        %777 = vmatpush1.msra.mxu0 %v744
        %778 = vmatprep.subr.mxu0 0.0
        %779 = vmatpush1.msra.mxu0 %v745
        %780 = vmatprep.subr.mxu0 0.0
        %781 = vmatpush1.msra.mxu0 %v746
        %782 = vmatprep.subr.mxu0 0.0
        %783 = vmatpush1.msra.mxu0 %v747
        %784 = vmatprep.subr.mxu0 0.0
        %785 = vmatpush1.msra.mxu0 %v748
        %786 = vmatprep.subr.mxu0 0.0
        %787 = vmatpush1.msra.mxu0 %v749
        %788 = vmatprep.subr.mxu0 0.0
        %789 = vmatpush1.msra.mxu0 %v750
        %790 = vmatprep.subr.mxu0 0.0
        %791 = vmatpush1.msra.mxu0 0.0
        %792 = vmatprep.subr.mxu0 0.0
        %793 = vmatpush1.msra.mxu0 0.0
        %794 = vmatprep.subr.mxu0 0.0
        %795 = vmatpush1.msra.mxu0 0.0
        %796 = vmatprep.subr.mxu0 0.0
        %797 = vmatpush1.msra.mxu0 0.0
        %798 = vmatprep.subr.mxu0 0.0
        %799 = vmatpush1.msra.mxu0 0.0
        %800 = vmatprep.subr.mxu0 0.0
        %801 = vmatpush1.msra.mxu0 0.0
        %802 = vmatprep.subr.mxu0 0.0
        %803 = vmatpush1.msra.mxu0 0.0
        %804 = vmatprep.subr.mxu0 0.0
        %805 = vmatpush1.msra.mxu0 0.0
        %806 = vmatprep.subr.mxu0 0.0
        %807 = vmatpush1.msra.mxu0 0.0
        %808 = vmatprep.subr.mxu0 0.0
        %809 = vmatpush1.msra.mxu0 0.0
        %810 = vmatprep.subr.mxu0 0.0
        %811 = vmatpush1.msra.mxu0 0.0
        %812 = vmatprep.subr.mxu0 0.0
        %813 = vmatpush1.msra.mxu0 0.0
        %814 = vmatprep.subr.mxu0 0.0
        %815 = vmatpush1.msra.mxu0 0.0
        %816 = vmatprep.subr.mxu0 0.0
        %817 = vmatpush1.msra.mxu0 0.0
        %818 = vmatprep.subr.mxu0 0.0
        %819 = vmatpush1.msra.mxu0 0.0
        %820 = vmatprep.subr.mxu0 0.0
        %821 = vmatpush1.msra.mxu0 0.0
        %822 = vmatprep.mubr.f32.mxu0 0.0
        %823 = vmatmul.mubr.f32.gmra.mrb[0].mxu0 %v734
        %v824 = vpop.f32.mrb[0].mxu0
        %v825 = vadd.f32 %v756, %v824
        %v826 = vpop.f32.mrb[0].mxu0
        %827 = vdwg.mxu0
        %v828 = vtanh.pop %v825
        %v829 = vld [vmem:[#allocation9] sm:$0xff]
        %v830 = vld [vmem:[#allocation9 + $0x8] sm:$0xff]
        %v831 = vld [vmem:[#allocation9 + $0x10] sm:$0xff]
        %v832 = vld [vmem:[#allocation9 + $0x18] sm:$0xff]
        %v833 = vld [vmem:[#allocation9 + $0x20] sm:$0xff]
        %v834 = vld [vmem:[#allocation9 + $0x28] sm:$0xff]
        %v835 = vld [vmem:[#allocation9 + $0x30] sm:$0xff]
        %v836 = vld [vmem:[#allocation9 + $0x38] sm:$0xff]
        %v837 = vld [vmem:[#allocation9 + $0x40] sm:$0xff]
        %v838 = vld [vmem:[#allocation9 + $0x48] sm:$0xff]
        %v839 = vld [vmem:[#allocation9 + $0x50] sm:$0xff]
        %v840 = vld [vmem:[#allocation9 + $0x58] sm:$0xff]
        %v841 = vld [vmem:[#allocation9 + $0x60] sm:$0xff]
        %v842 = vld [vmem:[#allocation9 + $0x68] sm:$0xff]
        %v843 = vld [vmem:[#allocation9 + $0x70] sm:$0xff]
        %v844 = vld [vmem:[#allocation9 + $0x78] sm:$0xff]
        %v845 = vld [vmem:[%s5] sm:$0x1]
        %v847 = vlaneseq
        %v848 = vshrl.u32 %v847, 7
        %v849 = vsub.s32 0, %v848
        %v850 = vrot.slane %v845, %v849
        %852 = vmatprep.subr.mxu0 0.0
        %853 = vmatpush1.msra.mxu0 %v829
        %854 = vmatprep.subr.mxu0 0.0
        %855 = vmatpush1.msra.mxu0 %v830
        %856 = vmatprep.subr.mxu0 0.0
        %857 = vmatpush1.msra.mxu0 %v831
        %858 = vmatprep.subr.mxu0 0.0
        %859 = vmatpush1.msra.mxu0 %v832
        %860 = vmatprep.subr.mxu0 0.0
        %861 = vmatpush1.msra.mxu0 %v833
        %862 = vmatprep.subr.mxu0 0.0
        %863 = vmatpush1.msra.mxu0 %v834
        %864 = vmatprep.subr.mxu0 0.0
        %865 = vmatpush1.msra.mxu0 %v835
        %866 = vmatprep.subr.mxu0 0.0
        %867 = vmatpush1.msra.mxu0 %v836
        %868 = vmatprep.subr.mxu0 0.0
        %869 = vmatpush1.msra.mxu0 %v837
        %870 = vmatprep.subr.mxu0 0.0
        %871 = vmatpush1.msra.mxu0 %v838
        %872 = vmatprep.subr.mxu0 0.0
        %873 = vmatpush1.msra.mxu0 %v839
        %874 = vmatprep.subr.mxu0 0.0
        %875 = vmatpush1.msra.mxu0 %v840
        %876 = vmatprep.subr.mxu0 0.0
        %877 = vmatpush1.msra.mxu0 %v841
        %878 = vmatprep.subr.mxu0 0.0
        %879 = vmatpush1.msra.mxu0 %v842
        %880 = vmatprep.subr.mxu0 0.0
        %881 = vmatpush1.msra.mxu0 %v843
        %882 = vmatprep.subr.mxu0 0.0
        %883 = vmatpush1.msra.mxu0 %v844
        %884 = vmatprep.subr.mxu0 0.0
        %885 = vmatpush1.msra.mxu0 0.0
        %886 = vmatprep.subr.mxu0 0.0
        %887 = vmatpush1.msra.mxu0 0.0
        %888 = vmatprep.subr.mxu0 0.0
        %889 = vmatpush1.msra.mxu0 0.0
        %890 = vmatprep.subr.mxu0 0.0
        %891 = vmatpush1.msra.mxu0 0.0
        %892 = vmatprep.subr.mxu0 0.0
        %893 = vmatpush1.msra.mxu0 0.0
        %894 = vmatprep.subr.mxu0 0.0
        %895 = vmatpush1.msra.mxu0 0.0
        %896 = vmatprep.subr.mxu0 0.0
        %897 = vmatpush1.msra.mxu0 0.0
        %898 = vmatprep.subr.mxu0 0.0
        %899 = vmatpush1.msra.mxu0 0.0
        %900 = vmatprep.subr.mxu0 0.0
        %901 = vmatpush1.msra.mxu0 0.0
        %902 = vmatprep.subr.mxu0 0.0
        %903 = vmatpush1.msra.mxu0 0.0
        %904 = vmatprep.subr.mxu0 0.0
        %905 = vmatpush1.msra.mxu0 0.0
        %906 = vmatprep.subr.mxu0 0.0
        %907 = vmatpush1.msra.mxu0 0.0
        %908 = vmatprep.subr.mxu0 0.0
        %909 = vmatpush1.msra.mxu0 0.0
        %910 = vmatprep.subr.mxu0 0.0
        %911 = vmatpush1.msra.mxu0 0.0
        %912 = vmatprep.subr.mxu0 0.0
        %913 = vmatpush1.msra.mxu0 0.0
        %914 = vmatprep.subr.mxu0 0.0
        %915 = vmatpush1.msra.mxu0 0.0
        %916 = vmatprep.mubr.f32.mxu0 0.0
        %917 = vmatmul.mubr.f32.gmra.mrb[0].mxu0 %v734
        %v918 = vpop.f32.mrb[0].mxu0
        %v919 = vadd.f32 %v850, %v918
        %v920 = vpop.f32.mrb[0].mxu0
        %921 = vdwg.mxu0
        %v922 = vxor.u32 %v919, 2147483648
        %v923 = vmul.f32 %v922, 1.442695
        %v924 = vpow.pop %v923
        %v925 = vadd.f32 %v924, 1.0
        %v926 = vrcp.pop %v925
        %v927 = vmul.f32 1.0, %v926
        %v928 = vmul.f32 %v828, %v927
        %v929 = vld [vmem:[%s6] sm:$0x1]
        %v931 = vlaneseq
        %v932 = vshrl.u32 %v931, 7
        %v933 = vsub.s32 0, %v932
        %v934 = vrot.slane %v929, %v933
        %v936 = vmul.f32 %v928, %v934
        %vm937 = vcmask 1043456
        %v938 = vsel %vm937, %v936, 0.0
        %939 = vadd.xlane.f32.xlu0 %v938
        %v940 = vpop.xlane.xlu0 %939
        %v941 = vld [vmem:[#allocation2] sm:$0x1]
        %v943 = vlaneseq
        %v944 = vshrl.u32 %v943, 7
        %v945 = vsub.s32 0, %v944
        %v946 = vrot.slane %v941, %v945
        %v948 = vadd.f32 %v940, %v946
        %vm949 = vcmask 3072
        %v950 = vsel %vm949, %v948, -inf
        %v951 = vrot.slane %v950, 4
        %v952 = vmax.f32 %v950, %v951
        %v953 = vrot.slane %v952, 2
        %v954 = vmax.f32 %v952, %v953
        %v955 = vrot.slane %v954, 1
        %v956 = vmax.f32 %v954, %v955
        %v957 = vsub.f32 %v948, %v956
        %v958 = vmul.f32 %v957, 1.442695
        %v959 = vpow.pop %v958
        %v960 = vsel %vm949, %v959, 0.0
        %v961 = vrot.slane %v960, 4
        %v962 = vadd.f32 %v960, %v961
        %v963 = vrot.slane %v962, 2
        %v964 = vadd.f32 %v962, %v963
        %v965 = vrot.slane %v964, 1
        %v966 = vadd.f32 %v964, %v965
        %v967 = vrcp.pop %v966
        %v968 = vmul.f32 %v959, %v967
        %970 = vset.pattern.permute.xlu0 0
        %971 = vperm.xlu0 %970, %v968
        %v972 = vpop.permute.xlu0 %971
        %v974 = vmul.f32 %v734, %v972
        %v975 = vsel %vm937, %v974, 0.0
        %v976 = vrot.slane %v975, 4
        %v977 = vadd.f32 %v975, %v976
        %v978 = vrot.slane %v977, 2
        %v979 = vadd.f32 %v977, %v978
        %v980 = vrot.slane %v979, 1
        %v981 = vadd.f32 %v979, %v980
        %v982 = vlaneseq
        %v983 = vshrl.u32 %v982, 7
        %v984 = vstv %s39
        %vm985 = vcmp.eq.s32.totalorder %v983, %v984
        %v986 = vld [vmem:[#allocation15] sm:$0x7]
        %v987 = vsel %vm985, %v981, %v986
        %988 = vst [vmem:[#allocation15] sm:$0x7] %v987
        %p989 = scmp.eq.s32.totalorder %s39, 2
        // Predicated region
        $region113: #{tpu_custom_call.1} parent=83 // pred_check
          %p990 = pneg %p989
        $region114: #{tpu_custom_call.1} parent=83 // pred_check_branch
          %992 = sbr.rel (%p990) target = $region116
        $region115: #{tpu_custom_call.1} parent=83 // pred_region
          %v993 = vld [vmem:[#allocation15] sm:$0x7]
          %v994 = vld [vmem:[#allocation10] sm:$0xff]
          %v995 = vld [vmem:[#allocation10 + $0x8] sm:$0xff]
          %v996 = vld [vmem:[#allocation10 + $0x10] sm:$0xff]
          %v997 = vld [vmem:[#allocation10 + $0x18] sm:$0xff]
          %v998 = vld [vmem:[#allocation10 + $0x20] sm:$0xff]
          %v999 = vld [vmem:[#allocation10 + $0x28] sm:$0xff]
          %v1000 = vld [vmem:[#allocation10 + $0x30] sm:$0xff]
          %v1001 = vld [vmem:[#allocation10 + $0x38] sm:$0xff]
          %v1002 = vld [vmem:[#allocation10 + $0x40] sm:$0xff]
          %v1003 = vld [vmem:[#allocation10 + $0x48] sm:$0xff]
          %v1004 = vld [vmem:[#allocation10 + $0x50] sm:$0xff]
          %v1005 = vld [vmem:[#allocation10 + $0x58] sm:$0xff]
          %v1006 = vld [vmem:[#allocation10 + $0x60] sm:$0xff]
          %v1007 = vld [vmem:[#allocation10 + $0x68] sm:$0xff]
          %v1008 = vld [vmem:[#allocation10 + $0x70] sm:$0xff]
          %v1009 = vld [vmem:[#allocation10 + $0x78] sm:$0xff]
          %v1010 = vld [vmem:[%s9] sm:$0x1]
          %v1012 = vlaneseq
          %v1013 = vshrl.u32 %v1012, 7
          %v1014 = vsub.s32 0, %v1013
          %v1015 = vrot.slane %v1010, %v1014
          %1017 = vmatprep.subr.mxu0 0.0
          %1018 = vmatpush1.msra.mxu0 %v994
          %1019 = vmatprep.subr.mxu0 0.0
          %1020 = vmatpush1.msra.mxu0 %v995
          %1021 = vmatprep.subr.mxu0 0.0
          %1022 = vmatpush1.msra.mxu0 %v996
          %1023 = vmatprep.subr.mxu0 0.0
          %1024 = vmatpush1.msra.mxu0 %v997
          %1025 = vmatprep.subr.mxu0 0.0
          %1026 = vmatpush1.msra.mxu0 %v998
          %1027 = vmatprep.subr.mxu0 0.0
          %1028 = vmatpush1.msra.mxu0 %v999
          %1029 = vmatprep.subr.mxu0 0.0
          %1030 = vmatpush1.msra.mxu0 %v1000
          %1031 = vmatprep.subr.mxu0 0.0
          %1032 = vmatpush1.msra.mxu0 %v1001
          %1033 = vmatprep.subr.mxu0 0.0
          %1034 = vmatpush1.msra.mxu0 %v1002
          %1035 = vmatprep.subr.mxu0 0.0
          %1036 = vmatpush1.msra.mxu0 %v1003
          %1037 = vmatprep.subr.mxu0 0.0
          %1038 = vmatpush1.msra.mxu0 %v1004
          %1039 = vmatprep.subr.mxu0 0.0
          %1040 = vmatpush1.msra.mxu0 %v1005
          %1041 = vmatprep.subr.mxu0 0.0
          %1042 = vmatpush1.msra.mxu0 %v1006
          %1043 = vmatprep.subr.mxu0 0.0
          %1044 = vmatpush1.msra.mxu0 %v1007
          %1045 = vmatprep.subr.mxu0 0.0
          %1046 = vmatpush1.msra.mxu0 %v1008
          %1047 = vmatprep.subr.mxu0 0.0
          %1048 = vmatpush1.msra.mxu0 %v1009
          %1049 = vmatprep.subr.mxu0 0.0
          %1050 = vmatpush1.msra.mxu0 0.0
          %1051 = vmatprep.subr.mxu0 0.0
          %1052 = vmatpush1.msra.mxu0 0.0
          %1053 = vmatprep.subr.mxu0 0.0
          %1054 = vmatpush1.msra.mxu0 0.0
          %1055 = vmatprep.subr.mxu0 0.0
          %1056 = vmatpush1.msra.mxu0 0.0
          %1057 = vmatprep.subr.mxu0 0.0
          %1058 = vmatpush1.msra.mxu0 0.0
          %1059 = vmatprep.subr.mxu0 0.0
          %1060 = vmatpush1.msra.mxu0 0.0
          %1061 = vmatprep.subr.mxu0 0.0
          %1062 = vmatpush1.msra.mxu0 0.0
          %1063 = vmatprep.subr.mxu0 0.0
          %1064 = vmatpush1.msra.mxu0 0.0
          %1065 = vmatprep.subr.mxu0 0.0
          %1066 = vmatpush1.msra.mxu0 0.0
          %1067 = vmatprep.subr.mxu0 0.0
          %1068 = vmatpush1.msra.mxu0 0.0
          %1069 = vmatprep.subr.mxu0 0.0
          %1070 = vmatpush1.msra.mxu0 0.0
          %1071 = vmatprep.subr.mxu0 0.0
          %1072 = vmatpush1.msra.mxu0 0.0
          %1073 = vmatprep.subr.mxu0 0.0
          %1074 = vmatpush1.msra.mxu0 0.0
          %1075 = vmatprep.subr.mxu0 0.0
          %1076 = vmatpush1.msra.mxu0 0.0
          %1077 = vmatprep.subr.mxu0 0.0
          %1078 = vmatpush1.msra.mxu0 0.0
          %1079 = vmatprep.subr.mxu0 0.0
          %1080 = vmatpush1.msra.mxu0 0.0
          %1081 = vmatprep.mubr.f32.mxu0 0.0
          %1082 = vmatmul.mubr.f32.gmra.mrb[0].mxu0 %v993
          %v1083 = vpop.f32.mrb[0].mxu0
          %v1084 = vadd.f32 %v1015, %v1083
          %v1085 = vpop.f32.mrb[0].mxu0
          %1086 = vdwg.mxu0
          %v1087 = vtanh.pop %v1084
          %v1088 = vld [vmem:[#allocation12] sm:$0xff]
          %v1089 = vld [vmem:[#allocation12 + $0x8] sm:$0xff]
          %v1090 = vld [vmem:[#allocation12 + $0x10] sm:$0xff]
          %v1091 = vld [vmem:[#allocation12 + $0x18] sm:$0xff]
          %v1092 = vld [vmem:[#allocation12 + $0x20] sm:$0xff]
          %v1093 = vld [vmem:[#allocation12 + $0x28] sm:$0xff]
          %v1094 = vld [vmem:[#allocation12 + $0x30] sm:$0xff]
          %v1095 = vld [vmem:[#allocation12 + $0x38] sm:$0xff]
          %v1096 = vld [vmem:[#allocation12 + $0x40] sm:$0xff]
          %v1097 = vld [vmem:[#allocation12 + $0x48] sm:$0xff]
          %v1098 = vld [vmem:[#allocation12 + $0x50] sm:$0xff]
          %v1099 = vld [vmem:[#allocation12 + $0x58] sm:$0xff]
          %v1100 = vld [vmem:[#allocation12 + $0x60] sm:$0xff]
          %v1101 = vld [vmem:[#allocation12 + $0x68] sm:$0xff]
          %v1102 = vld [vmem:[#allocation12 + $0x70] sm:$0xff]
          %v1103 = vld [vmem:[#allocation12 + $0x78] sm:$0xff]
          %v1104 = vld [vmem:[%s11] sm:$0x1]
          %v1106 = vlaneseq
          %v1107 = vshrl.u32 %v1106, 7
          %v1108 = vsub.s32 0, %v1107
          %v1109 = vrot.slane %v1104, %v1108
          %1111 = vmatprep.subr.mxu0 0.0
          %1112 = vmatpush1.msra.mxu0 %v1088
          %1113 = vmatprep.subr.mxu0 0.0
          %1114 = vmatpush1.msra.mxu0 %v1089
          %1115 = vmatprep.subr.mxu0 0.0
          %1116 = vmatpush1.msra.mxu0 %v1090
          %1117 = vmatprep.subr.mxu0 0.0
          %1118 = vmatpush1.msra.mxu0 %v1091
          %1119 = vmatprep.subr.mxu0 0.0
          %1120 = vmatpush1.msra.mxu0 %v1092
          %1121 = vmatprep.subr.mxu0 0.0
          %1122 = vmatpush1.msra.mxu0 %v1093
          %1123 = vmatprep.subr.mxu0 0.0
          %1124 = vmatpush1.msra.mxu0 %v1094
          %1125 = vmatprep.subr.mxu0 0.0
          %1126 = vmatpush1.msra.mxu0 %v1095
          %1127 = vmatprep.subr.mxu0 0.0
          %1128 = vmatpush1.msra.mxu0 %v1096
          %1129 = vmatprep.subr.mxu0 0.0
          %1130 = vmatpush1.msra.mxu0 %v1097
          %1131 = vmatprep.subr.mxu0 0.0
          %1132 = vmatpush1.msra.mxu0 %v1098
          %1133 = vmatprep.subr.mxu0 0.0
          %1134 = vmatpush1.msra.mxu0 %v1099
          %1135 = vmatprep.subr.mxu0 0.0
          %1136 = vmatpush1.msra.mxu0 %v1100
          %1137 = vmatprep.subr.mxu0 0.0
          %1138 = vmatpush1.msra.mxu0 %v1101
          %1139 = vmatprep.subr.mxu0 0.0
          %1140 = vmatpush1.msra.mxu0 %v1102
          %1141 = vmatprep.subr.mxu0 0.0
          %1142 = vmatpush1.msra.mxu0 %v1103
          %1143 = vmatprep.subr.mxu0 0.0
          %1144 = vmatpush1.msra.mxu0 0.0
          %1145 = vmatprep.subr.mxu0 0.0
          %1146 = vmatpush1.msra.mxu0 0.0
          %1147 = vmatprep.subr.mxu0 0.0
          %1148 = vmatpush1.msra.mxu0 0.0
          %1149 = vmatprep.subr.mxu0 0.0
          %1150 = vmatpush1.msra.mxu0 0.0
          %1151 = vmatprep.subr.mxu0 0.0
          %1152 = vmatpush1.msra.mxu0 0.0
          %1153 = vmatprep.subr.mxu0 0.0
          %1154 = vmatpush1.msra.mxu0 0.0
          %1155 = vmatprep.subr.mxu0 0.0
          %1156 = vmatpush1.msra.mxu0 0.0
          %1157 = vmatprep.subr.mxu0 0.0
          %1158 = vmatpush1.msra.mxu0 0.0
          %1159 = vmatprep.subr.mxu0 0.0
          %1160 = vmatpush1.msra.mxu0 0.0
          %1161 = vmatprep.subr.mxu0 0.0
          %1162 = vmatpush1.msra.mxu0 0.0
          %1163 = vmatprep.subr.mxu0 0.0
          %1164 = vmatpush1.msra.mxu0 0.0
          %1165 = vmatprep.subr.mxu0 0.0
          %1166 = vmatpush1.msra.mxu0 0.0
          %1167 = vmatprep.subr.mxu0 0.0
          %1168 = vmatpush1.msra.mxu0 0.0
          %1169 = vmatprep.subr.mxu0 0.0
          %1170 = vmatpush1.msra.mxu0 0.0
          %1171 = vmatprep.subr.mxu0 0.0
          %1172 = vmatpush1.msra.mxu0 0.0
          %1173 = vmatprep.subr.mxu0 0.0
          %1174 = vmatpush1.msra.mxu0 0.0
          %1175 = vmatprep.mubr.f32.mxu0 0.0
          %1176 = vmatmul.mubr.f32.gmra.mrb[0].mxu0 %v993
          %v1177 = vpop.f32.mrb[0].mxu0
          %v1178 = vadd.f32 %v1109, %v1177
          %v1179 = vpop.f32.mrb[0].mxu0
          %1180 = vdwg.mxu0
          %v1181 = vxor.u32 %v1178, 2147483648
          %v1182 = vmul.f32 %v1181, 1.442695
          %v1183 = vpow.pop %v1182
          %v1184 = vadd.f32 %v1183, 1.0
          %v1185 = vrcp.pop %v1184
          %v1186 = vmul.f32 1.0, %v1185
          %v1187 = vmul.f32 %v1087, %v1186
          %v1188 = vld [vmem:[%s12] sm:$0x1]
          %v1190 = vlaneseq
          %v1191 = vshrl.u32 %v1190, 7
          %v1192 = vsub.s32 0, %v1191
          %v1193 = vrot.slane %v1188, %v1192
          %v1195 = vmul.f32 %v1187, %v1193
          %vm1196 = vcmask 1042432
          %v1197 = vsel %vm1196, %v1195, 0.0
          %1198 = vadd.xlane.f32.xlu0 %v1197
          %v1199 = vpop.xlane.xlu0 %1198
          %v1200 = vld [vmem:[#allocation3] sm:$0x1]
          %v1202 = vlaneseq
          %v1203 = vshrl.u32 %v1202, 7
          %v1204 = vsub.s32 0, %v1203
          %v1205 = vrot.slane %v1200, %v1204
          %v1207 = vadd.f32 %v1199, %v1205
          %vm1208 = vcmask 2048
          %v1209 = vsel %vm1208, %v1207, -inf
          %v1210 = vrot.slane %v1209, 4
          %v1211 = vmax.f32 %v1209, %v1210
          %v1212 = vrot.slane %v1211, 2
          %v1213 = vmax.f32 %v1211, %v1212
          %v1214 = vrot.slane %v1213, 1
          %v1215 = vmax.f32 %v1213, %v1214
          %v1216 = vsub.f32 %v1207, %v1215
          %v1217 = vmul.f32 %v1216, 1.442695
          %v1218 = vpow.pop %v1217
          %v1219 = vsel %vm1208, %v1218, 0.0
          %v1220 = vrot.slane %v1219, 4
          %v1221 = vadd.f32 %v1219, %v1220
          %v1222 = vrot.slane %v1221, 2
          %v1223 = vadd.f32 %v1221, %v1222
          %v1224 = vrot.slane %v1223, 1
          %v1225 = vadd.f32 %v1223, %v1224
          %v1226 = vrcp.pop %v1225
          %v1227 = vmul.f32 %v1218, %v1226
          %1229 = vset.pattern.permute.xlu0 0
          %1230 = vperm.xlu0 %1229, %v1227
          %v1231 = vpop.permute.xlu0 %1230
          %v1233 = vmul.f32 %v993, %v1231
          %v1234 = vsel %vm1196, %v1233, 0.0
          %v1235 = vrot.slane %v1234, 4
          %v1236 = vadd.f32 %v1234, %v1235
          %v1237 = vrot.slane %v1236, 2
          %v1238 = vadd.f32 %v1236, %v1237
          %v1239 = vrot.slane %v1238, 1
          %v1240 = vadd.f32 %v1238, %v1239
          %v1241 = vld [vmem:[#allocation13] sm:$0xff]
          %v1242 = vld [vmem:[#allocation13 + $0x8] sm:$0xff]
          %v1243 = vld [vmem:[#allocation13 + $0x10] sm:$0xff]
          %v1244 = vld [vmem:[#allocation13 + $0x18] sm:$0xff]
          %v1245 = vld [vmem:[#allocation13 + $0x20] sm:$0xff]
          %v1246 = vld [vmem:[#allocation13 + $0x28] sm:$0xff]
          %v1247 = vld [vmem:[#allocation13 + $0x30] sm:$0xff]
          %v1248 = vld [vmem:[#allocation13 + $0x38] sm:$0xff]
          %v1249 = vld [vmem:[#allocation13 + $0x40] sm:$0xff]
          %v1250 = vld [vmem:[#allocation13 + $0x48] sm:$0xff]
          %v1251 = vld [vmem:[#allocation13 + $0x50] sm:$0xff]
          %v1252 = vld [vmem:[#allocation13 + $0x58] sm:$0xff]
          %v1253 = vld [vmem:[#allocation13 + $0x60] sm:$0xff]
          %v1254 = vld [vmem:[#allocation13 + $0x68] sm:$0xff]
          %v1255 = vld [vmem:[#allocation13 + $0x70] sm:$0xff]
          %v1256 = vld [vmem:[#allocation13 + $0x78] sm:$0xff]
          %v1257 = vld [vmem:[%s15] sm:$0x1]
          %1258 = vmatprep.subr.mxu0 0.0
          %1259 = vmatpush1.msra.mxu0 %v1241
          %1260 = vmatprep.subr.mxu0 0.0
          %1261 = vmatpush1.msra.mxu0 %v1242
          %1262 = vmatprep.subr.mxu0 0.0
          %1263 = vmatpush1.msra.mxu0 %v1243
          %1264 = vmatprep.subr.mxu0 0.0
          %1265 = vmatpush1.msra.mxu0 %v1244
          %1266 = vmatprep.subr.mxu0 0.0
          %1267 = vmatpush1.msra.mxu0 %v1245
          %1268 = vmatprep.subr.mxu0 0.0
          %1269 = vmatpush1.msra.mxu0 %v1246
          %1270 = vmatprep.subr.mxu0 0.0
          %1271 = vmatpush1.msra.mxu0 %v1247
          %1272 = vmatprep.subr.mxu0 0.0
          %1273 = vmatpush1.msra.mxu0 %v1248
          %1274 = vmatprep.subr.mxu0 0.0
          %1275 = vmatpush1.msra.mxu0 %v1249
          %1276 = vmatprep.subr.mxu0 0.0
          %1277 = vmatpush1.msra.mxu0 %v1250
          %1278 = vmatprep.subr.mxu0 0.0
          %1279 = vmatpush1.msra.mxu0 %v1251
          %1280 = vmatprep.subr.mxu0 0.0
          %1281 = vmatpush1.msra.mxu0 %v1252
          %1282 = vmatprep.subr.mxu0 0.0
          %1283 = vmatpush1.msra.mxu0 %v1253
          %1284 = vmatprep.subr.mxu0 0.0
          %1285 = vmatpush1.msra.mxu0 %v1254
          %1286 = vmatprep.subr.mxu0 0.0
          %1287 = vmatpush1.msra.mxu0 %v1255
          %1288 = vmatprep.subr.mxu0 0.0
          %1289 = vmatpush1.msra.mxu0 %v1256
          %1290 = vmatprep.subr.mxu0 0.0
          %1291 = vmatpush1.msra.mxu0 0.0
          %1292 = vmatprep.subr.mxu0 0.0
          %1293 = vmatpush1.msra.mxu0 0.0
          %1294 = vmatprep.subr.mxu0 0.0
          %1295 = vmatpush1.msra.mxu0 0.0
          %1296 = vmatprep.subr.mxu0 0.0
          %1297 = vmatpush1.msra.mxu0 0.0
          %1298 = vmatprep.subr.mxu0 0.0
          %1299 = vmatpush1.msra.mxu0 0.0
          %1300 = vmatprep.subr.mxu0 0.0
          %1301 = vmatpush1.msra.mxu0 0.0
          %1302 = vmatprep.subr.mxu0 0.0
          %1303 = vmatpush1.msra.mxu0 0.0
          %1304 = vmatprep.subr.mxu0 0.0
          %1305 = vmatpush1.msra.mxu0 0.0
          %1306 = vmatprep.subr.mxu0 0.0
          %1307 = vmatpush1.msra.mxu0 0.0
          %1308 = vmatprep.subr.mxu0 0.0
          %1309 = vmatpush1.msra.mxu0 0.0
          %1310 = vmatprep.subr.mxu0 0.0
          %1311 = vmatpush1.msra.mxu0 0.0
          %1312 = vmatprep.subr.mxu0 0.0
          %1313 = vmatpush1.msra.mxu0 0.0
          %1314 = vmatprep.subr.mxu0 0.0
          %1315 = vmatpush1.msra.mxu0 0.0
          %1316 = vmatprep.subr.mxu0 0.0
          %1317 = vmatpush1.msra.mxu0 0.0
          %1318 = vmatprep.subr.mxu0 0.0
          %1319 = vmatpush1.msra.mxu0 0.0
          %1320 = vmatprep.subr.mxu0 0.0
          %1321 = vmatpush1.msra.mxu0 0.0
          %1322 = vmatprep.mubr.f32.mxu0 0.0
          %1323 = vmatmul.mubr.f32.gmra.mrb[0].mxu0 %v1240
          %v1324 = vpop.f32.mrb[0].mxu0
          %v1325 = vadd.f32 %v1257, %v1324
          %v1326 = vpop.f32.mrb[0].mxu0
          %1327 = vdwg.mxu0
          %1328 = vst [vmem:[#allocation16] sm:$0x1] %v1325
        $region116: #{tpu_custom_call.1} parent=83 // pred_fallthru
          _
        // Predicated region
        $region117: #{tpu_custom_call.1} parent=83 // pred_check
          %p1329 = pneg %p393
        $region118: #{tpu_custom_call.1} parent=83 // pred_check_branch
          %1331 = sbr.rel (%p1329) target = $region120
        $region119: #{tpu_custom_call.1} parent=83 // pred_region
          %s1333 = ssub.s32 64, 64
          %1334 = vsyncadd [#allocation6], %s1333
          %s1336 = sshll.u32 [#allocation15], 4
          %s1337 = int_to_ptr.vmem [resolvable:$true] %s1336
          %1339 = dma.vmem_to_hbm [thread:$0]  %s1337, 64, %s16, [#allocation6]
        $region120: #{tpu_custom_call.1} parent=83 // pred_fallthru
          _
        // Predicated region
        $region121: #{tpu_custom_call.1} parent=83 // pred_check
          %p1340 = pneg %p414
        $region122: #{tpu_custom_call.1} parent=83 // pred_check_branch
          %1342 = sbr.rel (%p1340) target = $region124
        $region123: #{tpu_custom_call.1} parent=83 // pred_region
          %s1344 = ssub.s32 16, 16
          %1345 = vsyncadd [#allocation17], %s1344
          %s1347 = sshll.u32 [#allocation16], 4
          %s1348 = int_to_ptr.vmem [resolvable:$true] %s1347
          %1350 = dma.vmem_to_hbm [thread:$0]  %s1348, 16, %s17, [#allocation17]
        $region124: #{tpu_custom_call.1} parent=83 // pred_fallthru
          _
        // Predicated region
        $region125: #{tpu_custom_call.1} parent=83 // pred_check
          %p1351 = pneg %p393
        $region126: #{tpu_custom_call.1} parent=83 // pred_check_branch
          %1353 = sbr.rel (%p1351) target = $region128
        $region127: #{tpu_custom_call.1} parent=83 // pred_region
          %1354 = dma.done [#allocation6], 64
        $region128: #{tpu_custom_call.1} parent=83 // pred_fallthru
          _
        // Predicated region
        $region129: #{tpu_custom_call.1} parent=83 // pred_check
          %p1355 = pneg %p414
        $region130: #{tpu_custom_call.1} parent=83 // pred_check_branch
          %1357 = sbr.rel (%p1355) target = $region132
        $region131: #{tpu_custom_call.1} parent=83 // pred_region
          %1358 = dma.done [#allocation17], 16
        $region132: #{tpu_custom_call.1} parent=83 // pred_fallthru
          _
      $region84: #{tpu_custom_call.1} parent=5 // pred_fallthru
        _
      %p1359 = scmp.le.s32.totalorder 2, %s34
      // Predicated region
      $region133: #{tpu_custom_call.1} parent=5 // pred_check
        %p1360 = pneg %p1359
      $region134: #{tpu_custom_call.1} parent=5 // pred_check_branch
        %1362 = sbr.rel (%p1360) target = $region136
      $region135: #{tpu_custom_call.1} parent=5 // pred_region
        %s1363 = ssub.s32 %s34, 2
      $region136: #{tpu_custom_call.1} parent=5 // pred_fallthru
        _
    $region6: #{tpu_custom_call.1} parent=1 // loop_footer
      %s38 = sadd.s32 1, %s34
    $region7: #{tpu_custom_call.1} parent=1 // loop_footer_branch
      %33 = sbr.rel target = $region3
    $region8: #{tpu_custom_call.1} parent=1 // loop_exit
      _
    %1364 = vsyncpa [#allocation5], 1
    %s1365 = scalar_lea.sflag [#allocation5], 1
    %1366 = vsyncpa %s1365, 1
    %1367 = vsyncpa [#allocation8], 1
    %1368 = vsyncpa [#allocation11], 1
    %1369 = vsyncpa [#allocation14], 1
    %1370 = vsyncpa [#allocation6], 1
    %s1371 = scalar_lea.sflag [#allocation6], 1
    %1372 = vsyncpa %s1371, 1
    %1373 = vsyncpa [#allocation17], 1

</llo_original>
